<compile_context>
chip_gen: v6e
topology: v6e:2x2x1
jax: 0.10.0
libtpu: 0.0.40
codegen_flags: <defaults>
</compile_context>

<pallas_src>
import functools

import jax
import jax.numpy as jnp
from jax.experimental import pallas as pl
from jax.experimental.pallas import tpu as pltpu


# --------------------------- VMEM budgeting -------------------------------- #

def _query_vmem_limit_bytes():
    """Scoped-VMEM limit: ~3/4 of physical VMEM, capped at 100 MiB.
    -> ~96 MiB on v5e/v6e (128 MiB VMEM), ~48 MiB on v7x (64 MiB per TC)."""
    try:
        cap = int(pltpu.get_tpu_info().vmem_capacity_bytes)
    except Exception:
        cap = 64 * 1024 * 1024            # conservative: assume v7x-sized VMEM
    return max(16 * 1024 * 1024, min(cap * 3 // 4, 100 * 1024 * 1024))


_VMEM_LIMIT_BYTES = _query_vmem_limit_bytes()
# Headroom below the scoped limit for double-buffered resident weights and
# compiler-internal scratch when sizing tiles.
_TILE_BUDGET_BYTES = int(_VMEM_LIMIT_BYTES * 0.6)


def _pick_row_tile(n, d_in, d_out, budget_bytes):
    """Largest multiple-of-8 row tile that (a) fits the VMEM budget alongside
    the (double-buffered) resident weights, (b) leaves >= 2 grid steps so both
    v7x TensorCores get work, and (c) never exceeds 1024 rows per step."""
    if n <= 8:
        return n
    per_row = 4 * 4 * (d_in + d_out)          # double-buffered f32 in/out rows + temps
    w_bytes = 2 * 4 * d_in * d_out            # resident weights (counted double-buffered)
    cap = max(8, (budget_bytes - w_bytes) // per_row)
    cap = min(cap, 1024, n)
    if n >= 16:
        cap = min(cap, max(8, n // 2))        # >= 2 grid steps (v7x dual-TC)
    return max(8, (cap // 8) * 8)


def _pick_group_tile(num_groups, seq, dh, budget_bytes):
    """Attention groups per grid step, sized so the f32 (gt,S,S) softmax
    temporaries plus double-buffered (S,dh) Q/K/V/ctx blocks fit the budget,
    and capped so the grid keeps >= 2 steps for v7x's two TensorCores."""
    per_group = 4 * (3 * seq * seq + 8 * seq * dh)
    cap = max(1, budget_bytes // per_group)
    if num_groups >= 2:
        cap = min(cap, num_groups // 2)
    cap = min(cap, num_groups)
    best = 1
    for t in range(1, cap + 1):               # largest divisor of num_groups <= cap
        if num_groups % t == 0:
            best = t
    return best


# ------------------------------- kernels ----------------------------------- #

def _qkv_kernel(x_ref, wq_ref, wk_ref, wv_ref, bq_ref, bk_ref, bv_ref,
                q_ref, k_ref, v_ref, *, compute_dtype):
    # x is DMA'd into VMEM once per row tile and reused by all three MXU
    # matmuls; the three outputs are written as separate dense (tm, D) tiles.
    # (The softmax scale is already folded into wq/bq at parameter-prep time.)
    x = x_ref[...].astype(compute_dtype)
    q_ref[...] = (jnp.dot(x, wq_ref[...], preferred_element_type=jnp.float32)
                  + bq_ref[...]).astype(q_ref.dtype)
    k_ref[...] = (jnp.dot(x, wk_ref[...], preferred_element_type=jnp.float32)
                  + bk_ref[...]).astype(k_ref.dtype)
    v_ref[...] = (jnp.dot(x, wv_ref[...], preferred_element_type=jnp.float32)
                  + bv_ref[...]).astype(v_ref.dtype)


def _attn_kernel(q_ref, k_ref, v_ref, o_ref, *, compute_dtype):
    # gt attention groups per grid step, each (S, dh).  MXU operands in
    # compute_dtype (bf16 by default) with f32 accumulation; softmax math f32.
    q = q_ref[...].astype(compute_dtype)
    k = k_ref[...].astype(compute_dtype)
    v = v_ref[...].astype(compute_dtype)
    # Contract on dh with batch over groups (no explicit k transpose).
    s = jax.lax.dot_general(q, k, (((2,), (2,)), ((0,), (0,))),
                            preferred_element_type=jnp.float32)
    s = s - jnp.max(s, axis=-1, keepdims=True)        # stabilized softmax
    p = jnp.exp(s)                                    # f32 exp (v5e-safe)
    p = p * pl.reciprocal(jnp.sum(p, axis=-1, keepdims=True), approx=True)
    ctx = jax.lax.dot_general(p.astype(compute_dtype), v,
                              (((2,), (1,)), ((0,), (0,))),
                              preferred_element_type=jnp.float32)
    o_ref[...] = ctx.astype(o_ref.dtype)
    # NOTE: for S >~ 1k tokens this kernel should switch to a flash-style
    # (q_tile, kv_tile) grid with online softmax; at the moderate S this
    # module targets the VMEM-budgeted gt keeps the full-S softmax in budget.


def _out_kernel(ctx_ref, x_ref, w_ref, b_ref, gamma_ref, beta_ref, o_ref,
                *, eps, compute_dtype):
    # fc(context) + residual + LayerNorm, fused, per row tile.
    y = jnp.dot(ctx_ref[...].astype(compute_dtype), w_ref[...],
                preferred_element_type=jnp.float32)
    y = y + b_ref[...] + x_ref[...]
    mean = jnp.mean(y, axis=-1, keepdims=True)
    var = jnp.mean(jnp.square(y - mean), axis=-1, keepdims=True)
    y = (y - mean) * jax.lax.rsqrt(var + eps)
    o_ref[...] = (y * gamma_ref[...] + beta_ref[...]).astype(o_ref.dtype)


# ------------------------------ wrappers ------------------------------------ #

def _compiler_params():
    return pltpu.CompilerParams(dimension_semantics=("parallel",),
                                vmem_limit_bytes=_VMEM_LIMIT_BYTES)


def _qkv_proj(x2d, p, compute_dtype):
    n, d = x2d.shape
    tm = _pick_row_tile(n, d, 3 * d, _TILE_BUDGET_BYTES)
    kern = functools.partial(_qkv_kernel, compute_dtype=compute_dtype)
    row = pl.BlockSpec((tm, d), lambda i: (i, 0))
    w_const = pl.BlockSpec((d, d), lambda i: (0, 0))     # weights stay VMEM-resident
    b_const = pl.BlockSpec((1, d), lambda i: (0, 0))
    out_sd = jax.ShapeDtypeStruct((n, d), x2d.dtype)
    return pl.pallas_call(
        kern,
        out_shape=(out_sd, out_sd, out_sd),
        grid=(pl.cdiv(n, tm),),
        in_specs=[row, w_const, w_const, w_const, b_const, b_const, b_const],
        out_specs=(row, row, row),
        compiler_params=_compiler_params(),
    )(x2d, p["wq"], p["wk"], p["wv"], p["bq"], p["bk"], p["bv"])


def _attention(q2d, k2d, v2d, num_groups, seq, dh, compute_dtype):
    n, d = q2d.shape
    gt = _pick_group_tile(num_groups, seq, dh, _TILE_BUDGET_BYTES)
    # The module's non-standard .view(batch*num_head, -1, dim_head): a pure
    # row-major reshape, free in XLA (no data movement).
    q = q2d.reshape(num_groups, seq, dh)
    k = k2d.reshape(num_groups, seq, dh)
    v = v2d.reshape(num_groups, seq, dh)
    kern = functools.partial(_attn_kernel, compute_dtype=compute_dtype)
    spec = pl.BlockSpec((gt, seq, dh), lambda i: (i, 0, 0))
    ctx = pl.pallas_call(
        kern,
        out_shape=jax.ShapeDtypeStruct((num_groups, seq, dh), q2d.dtype),
        grid=(num_groups // gt,),
        in_specs=[spec, spec, spec],
        out_specs=spec,
        compiler_params=_compiler_params(),
    )(q, k, v)
    # == context.view(batch, -1, dim_head*num_head) flattened to 2D (free).
    return ctx.reshape(n, d)


def _out_proj_ln(ctx2d, x2d, wo, bo, gamma, beta, compute_dtype, eps=1e-5):
    n, d = x2d.shape
    tm = _pick_row_tile(n, 2 * d, d, _TILE_BUDGET_BYTES)   # two row inputs + one output
    kern = functools.partial(_out_kernel, eps=eps, compute_dtype=compute_dtype)
    row = pl.BlockSpec((tm, d), lambda i: (i, 0))
    const_w = pl.BlockSpec((d, d), lambda i: (0, 0))       # resident out-proj weight
    const_v = pl.BlockSpec((1, d), lambda i: (0, 0))
    return pl.pallas_call(
        kern,
        out_shape=jax.ShapeDtypeStruct((n, d), x2d.dtype),
        grid=(pl.cdiv(n, tm),),
        in_specs=[row, row, const_w, const_v, const_v, const_v],
        out_specs=row,
        compiler_params=_compiler_params(),
    )(ctx2d, x2d, wo, bo, gamma, beta)


# --------------------------- parameter prep --------------------------------- #

def prepare_params(raw, num_head, mxu_dtype=jnp.bfloat16):
    """One-time (outside jit) parameter preparation:
       * fold the 1/sqrt(dim_head) attention scale into the Q projection,
       * store matmul weights in the MXU-operand dtype (bf16 by default),
       * keep biases / LayerNorm params in f32 (elementwise math stays f32)."""
    d_model = raw["wq"].shape[0]
    dh = d_model // num_head
    scale = float(dh) ** -0.5
    return {
        "wq": (raw["wq"] * scale).astype(mxu_dtype),
        "bq": (raw["bq"] * scale).astype(jnp.float32),
        "wk": raw["wk"].astype(mxu_dtype),
        "bk": raw["bk"].astype(jnp.float32),
        "wv": raw["wv"].astype(mxu_dtype),
        "bv": raw["bv"].astype(jnp.float32),
        "wo": raw["wo"].astype(mxu_dtype),
        "bo": raw["bo"].astype(jnp.float32),
        "gamma": raw["gamma"].astype(jnp.float32),
        "beta": raw["beta"].astype(jnp.float32),
    }


# ------------------------------ forward ------------------------------------- #

@functools.partial(jax.jit, static_argnames=("num_head", "mxu_dtype"))
def multi_head_attention(x, params, num_head, mxu_dtype=jnp.bfloat16):
    """x: (B, S, D) float32; params from prepare_params. Mirrors
    Multi_Head_Attention.forward (dropout p=0.0 -> identity)."""
    B, S, D = x.shape
    dh = D // num_head
    x2d = x.reshape(B * S, D)

    q2d, k2d, v2d = _qkv_proj(x2d, params, mxu_dtype)
    ctx2d = _attention(q2d, k2d, v2d, B * num_head, S, dh, mxu_dtype)
    out = _out_proj_ln(ctx2d, x2d, params["wo"], params["bo"],
                       params["gamma"], params["beta"], mxu_dtype)
    return out.reshape(B, S, D)


# ------------------------------ reference ------------------------------------ #

def _reference(x, raw, num_head):
    """Pure-JAX f32 reference of Multi_Head_Attention.forward."""
    B, S, D = x.shape
    dh = D // num_head
    x2d = x.reshape(B * S, D)
    Q = (x2d @ raw["wq"] + raw["bq"]).reshape(B * num_head, -1, dh)
    K = (x2d @ raw["wk"] + raw["bk"]).reshape(B * num_head, -1, dh)
    V = (x2d @ raw["wv"] + raw["bv"]).reshape(B * num_head, -1, dh)
    att = jnp.einsum("gqd,gkd->gqk", Q, K) * (dh ** -0.5)
    att = jax.nn.softmax(att, axis=-1)
    ctx = jnp.einsum("gqk,gkd->gqd", att, V).reshape(B * S, D)
    y = ctx @ raw["wo"] + raw["bo"] + x2d
    mean = y.mean(-1, keepdims=True)
    var = ((y - mean) ** 2).mean(-1, keepdims=True)
    y = (y - mean) / jnp.sqrt(var + 1e-5)
    y = y * raw["gamma"] + raw["beta"]
    return y.reshape(B, S, D)


# -------------------------------- main --------------------------------------- #

if __name__ == "__main__":
    B, S, D, H = 2, 8, 32, 4
    key = jax.random.PRNGKey(0)
    ks = jax.random.split(key, 9)
    lim = float(D) ** -0.5

    raw = {
        "wq": jax.random.uniform(ks[0], (D, D), jnp.float32, -lim, lim),
        "bq": jax.random.uniform(ks[1], (1, D), jnp.float32, -lim, lim),
        "wk": jax.random.uniform(ks[2], (D, D), jnp.float32, -lim, lim),
        "bk": jax.random.uniform(ks[3], (1, D), jnp.float32, -lim, lim),
        "wv": jax.random.uniform(ks[4], (D, D), jnp.float32, -lim, lim),
        "bv": jax.random.uniform(ks[5], (1, D), jnp.float32, -lim, lim),
        "wo": jax.random.uniform(ks[6], (D, D), jnp.float32, -lim, lim),
        "bo": jax.random.uniform(ks[7], (1, D), jnp.float32, -lim, lim),
        "gamma": jnp.ones((1, D), jnp.float32),   # nn.LayerNorm defaults
        "beta": jnp.zeros((1, D), jnp.float32),
    }
    x = jax.random.normal(ks[8], (B, S, D), jnp.float32)

    ref = _reference(x, raw, H)

    # 1) Structural correctness: all-f32 MXU operands, tight tolerance
    #    (only the EUP approximate reciprocal in the softmax differs).
    p_f32 = prepare_params(raw, H, mxu_dtype=jnp.float32)
    out_f32 = jax.block_until_ready(
        multi_head_attention(x, p_f32, H, mxu_dtype=jnp.float32))
    assert out_f32.shape == (B, S, D)
    assert jnp.allclose(out_f32, ref, atol=2e-3, rtol=2e-3), "f32 mismatch vs reference"

    # 2) Default performance config: bf16 MXU operands, f32 accumulation and
    #    f32 softmax/LayerNorm.  Tolerance covers bf16 operand rounding.
    p_bf16 = prepare_params(raw, H, mxu_dtype=jnp.bfloat16)
    out = jax.block_until_ready(
        multi_head_attention(x, p_bf16, H, mxu_dtype=jnp.bfloat16))
    assert out.shape == (B, S, D)
    assert jnp.allclose(out, ref, atol=1e-1, rtol=1e-1), "bf16 mismatch vs reference"

    print("KERNEL_OK")
</pallas_src>

<mosaic_0001>
module attributes {stable_mosaic.version = 11 : i64} {
  func.func @_qkv_kernel(%arg0: i32, %arg1: memref<8x32xf32, #tpu.memory_space<vmem>>, %arg2: memref<32x32xf32, #tpu.memory_space<vmem>>, %arg3: memref<32x32xf32, #tpu.memory_space<vmem>>, %arg4: memref<32x32xf32, #tpu.memory_space<vmem>>, %arg5: memref<1x32xf32, #tpu.memory_space<vmem>>, %arg6: memref<1x32xf32, #tpu.memory_space<vmem>>, %arg7: memref<1x32xf32, #tpu.memory_space<vmem>>, %arg8: memref<8x32xf32, #tpu.memory_space<vmem>>, %arg9: memref<8x32xf32, #tpu.memory_space<vmem>>, %arg10: memref<8x32xf32, #tpu.memory_space<vmem>>) attributes {dimension_semantics = [#tpu.dimension_semantics<parallel>], iteration_bounds = array<i64: 2>, scalar_prefetch = 0 : i64, scratch_operands = 0 : i64, tpu.core_type = #tpu.core_type<tc>, window_params = [{transform_indices = @transform_0, window_bounds = array<i64: 8, 32>}, {pipeline_mode = #tpu.pipeline_mode<synchronous>, transform_indices = @transform_1, window_bounds = array<i64: 32, 32>}, {pipeline_mode = #tpu.pipeline_mode<synchronous>, transform_indices = @transform_2, window_bounds = array<i64: 32, 32>}, {pipeline_mode = #tpu.pipeline_mode<synchronous>, transform_indices = @transform_3, window_bounds = array<i64: 32, 32>}, {pipeline_mode = #tpu.pipeline_mode<synchronous>, transform_indices = @transform_4, window_bounds = array<i64: 1, 32>}, {pipeline_mode = #tpu.pipeline_mode<synchronous>, transform_indices = @transform_5, window_bounds = array<i64: 1, 32>}, {pipeline_mode = #tpu.pipeline_mode<synchronous>, transform_indices = @transform_6, window_bounds = array<i64: 1, 32>}, {transform_indices = @transform_7, window_bounds = array<i64: 8, 32>}, {transform_indices = @transform_8, window_bounds = array<i64: 8, 32>}, {transform_indices = @transform_9, window_bounds = array<i64: 8, 32>}]} {
    %c0 = arith.constant 0 : index
    %c0_0 = arith.constant 0 : index
    %0 = vector.load %arg1[%c0, %c0_0] : memref<8x32xf32, #tpu.memory_space<vmem>>, vector<8x32xf32>
    %c0_1 = arith.constant 0 : index
    %c0_2 = arith.constant 0 : index
    %1 = vector.load %arg2[%c0_1, %c0_2] : memref<32x32xf32, #tpu.memory_space<vmem>>, vector<32x32xf32>
    %cst = arith.constant dense<0.000000e+00> : vector<8x32xf32>
    %2 = tpu.matmul %0, %1, %cst {dimension_numbers = #tpu.dot_dimension_numbers<[1], [0], [0], [1], [0, 0, 1, 1], [], []>} : vector<8x32xf32>, vector<32x32xf32>, vector<8x32xf32> -> vector<8x32xf32>
    %c0_3 = arith.constant 0 : index
    %c0_4 = arith.constant 0 : index
    %3 = vector.load %arg5[%c0_3, %c0_4] : memref<1x32xf32, #tpu.memory_space<vmem>>, vector<1x32xf32>
    %4 = vector.broadcast %3 : vector<1x32xf32> to vector<8x32xf32>
    %5 = arith.addf %2, %4 : vector<8x32xf32>
    %c0_5 = arith.constant 0 : index
    %c0_6 = arith.constant 0 : index
    %6 = vector.load %arg8[%c0_5, %c0_6] : memref<8x32xf32, #tpu.memory_space<vmem>>, vector<8x32xf32>
    tpu.vector_store %arg8[%c0_5, %c0_6], %5 {strides = array<i32>} : memref<8x32xf32, #tpu.memory_space<vmem>>, vector<8x32xf32>,
    %c0_7 = arith.constant 0 : index
    %c0_8 = arith.constant 0 : index
    %7 = vector.load %arg3[%c0_7, %c0_8] : memref<32x32xf32, #tpu.memory_space<vmem>>, vector<32x32xf32>
    %cst_9 = arith.constant dense<0.000000e+00> : vector<8x32xf32>
    %8 = tpu.matmul %0, %7, %cst_9 {dimension_numbers = #tpu.dot_dimension_numbers<[1], [0], [0], [1], [0, 0, 1, 1], [], []>} : vector<8x32xf32>, vector<32x32xf32>, vector<8x32xf32> -> vector<8x32xf32>
    %c0_10 = arith.constant 0 : index
    %c0_11 = arith.constant 0 : index
    %9 = vector.load %arg6[%c0_10, %c0_11] : memref<1x32xf32, #tpu.memory_space<vmem>>, vector<1x32xf32>
    %10 = vector.broadcast %9 : vector<1x32xf32> to vector<8x32xf32>
    %11 = arith.addf %8, %10 : vector<8x32xf32>
    %c0_12 = arith.constant 0 : index
    %c0_13 = arith.constant 0 : index
    %12 = vector.load %arg9[%c0_12, %c0_13] : memref<8x32xf32, #tpu.memory_space<vmem>>, vector<8x32xf32>
    tpu.vector_store %arg9[%c0_12, %c0_13], %11 {strides = array<i32>} : memref<8x32xf32, #tpu.memory_space<vmem>>, vector<8x32xf32>,
    %c0_14 = arith.constant 0 : index
    %c0_15 = arith.constant 0 : index
    %13 = vector.load %arg4[%c0_14, %c0_15] : memref<32x32xf32, #tpu.memory_space<vmem>>, vector<32x32xf32>
    %cst_16 = arith.constant dense<0.000000e+00> : vector<8x32xf32>
    %14 = tpu.matmul %0, %13, %cst_16 {dimension_numbers = #tpu.dot_dimension_numbers<[1], [0], [0], [1], [0, 0, 1, 1], [], []>} : vector<8x32xf32>, vector<32x32xf32>, vector<8x32xf32> -> vector<8x32xf32>
    %c0_17 = arith.constant 0 : index
    %c0_18 = arith.constant 0 : index
    %15 = vector.load %arg7[%c0_17, %c0_18] : memref<1x32xf32, #tpu.memory_space<vmem>>, vector<1x32xf32>
    %16 = vector.broadcast %15 : vector<1x32xf32> to vector<8x32xf32>
    %17 = arith.addf %14, %16 : vector<8x32xf32>
    %c0_19 = arith.constant 0 : index
    %c0_20 = arith.constant 0 : index
    %18 = vector.load %arg10[%c0_19, %c0_20] : memref<8x32xf32, #tpu.memory_space<vmem>>, vector<8x32xf32>
    tpu.vector_store %arg10[%c0_19, %c0_20], %17 {strides = array<i32>} : memref<8x32xf32, #tpu.memory_space<vmem>>, vector<8x32xf32>,
    return
  }
  func.func @transform_0(%arg0: i32) -> (i32, i32) {
    %c0_i32 = arith.constant 0 : i32
    %c0_i32_0 = arith.constant 0 : i32
    return %arg0, %c0_i32 : i32, i32
  }
  func.func @transform_1(%arg0: i32) -> (i32, i32) {
    %c0_i32 = arith.constant 0 : i32
    %c0_i32_0 = arith.constant 0 : i32
    %c0_i32_1 = arith.constant 0 : i32
    return %c0_i32, %c0_i32_0 : i32, i32
  }
  func.func @transform_2(%arg0: i32) -> (i32, i32) {
    %c0_i32 = arith.constant 0 : i32
    %c0_i32_0 = arith.constant 0 : i32
    %c0_i32_1 = arith.constant 0 : i32
    return %c0_i32, %c0_i32_0 : i32, i32
  }
  func.func @transform_3(%arg0: i32) -> (i32, i32) {
    %c0_i32 = arith.constant 0 : i32
    %c0_i32_0 = arith.constant 0 : i32
    %c0_i32_1 = arith.constant 0 : i32
    return %c0_i32, %c0_i32_0 : i32, i32
  }
  func.func @transform_4(%arg0: i32) -> (i32, i32) {
    %c0_i32 = arith.constant 0 : i32
    %c0_i32_0 = arith.constant 0 : i32
    %c0_i32_1 = arith.constant 0 : i32
    return %c0_i32, %c0_i32_0 : i32, i32
  }
  func.func @transform_5(%arg0: i32) -> (i32, i32) {
    %c0_i32 = arith.constant 0 : i32
    %c0_i32_0 = arith.constant 0 : i32
    %c0_i32_1 = arith.constant 0 : i32
    return %c0_i32, %c0_i32_0 : i32, i32
  }
  func.func @transform_6(%arg0: i32) -> (i32, i32) {
    %c0_i32 = arith.constant 0 : i32
    %c0_i32_0 = arith.constant 0 : i32
    %c0_i32_1 = arith.constant 0 : i32
    return %c0_i32, %c0_i32_0 : i32, i32
  }
  func.func @transform_7(%arg0: i32) -> (i32, i32) {
    %c0_i32 = arith.constant 0 : i32
    %c0_i32_0 = arith.constant 0 : i32
    return %arg0, %c0_i32 : i32, i32
  }
  func.func @transform_8(%arg0: i32) -> (i32, i32) {
    %c0_i32 = arith.constant 0 : i32
    %c0_i32_0 = arith.constant 0 : i32
    return %arg0, %c0_i32 : i32, i32
  }
  func.func @transform_9(%arg0: i32) -> (i32, i32) {
    %c0_i32 = arith.constant 0 : i32
    %c0_i32_0 = arith.constant 0 : i32
    return %arg0, %c0_i32 : i32, i32
  }
}

module attributes {stable_mosaic.version = 11 : i64} {
  func.func @_attn_kernel(%arg0: i32, %arg1: memref<4x8x8xf32, #tpu.memory_space<vmem>>, %arg2: memref<4x8x8xf32, #tpu.memory_space<vmem>>, %arg3: memref<4x8x8xf32, #tpu.memory_space<vmem>>, %arg4: memref<4x8x8xf32, #tpu.memory_space<vmem>>) attributes {dimension_semantics = [#tpu.dimension_semantics<parallel>], iteration_bounds = array<i64: 2>, scalar_prefetch = 0 : i64, scratch_operands = 0 : i64, tpu.core_type = #tpu.core_type<tc>, window_params = [{transform_indices = @transform_0, window_bounds = array<i64: 4, 8, 8>}, {transform_indices = @transform_1, window_bounds = array<i64: 4, 8, 8>}, {transform_indices = @transform_2, window_bounds = array<i64: 4, 8, 8>}, {transform_indices = @transform_3, window_bounds = array<i64: 4, 8, 8>}]} {
    %c0 = arith.constant 0 : index
    %c0_0 = arith.constant 0 : index
    %c0_1 = arith.constant 0 : index
    %0 = vector.load %arg1[%c0, %c0_0, %c0_1] : memref<4x8x8xf32, #tpu.memory_space<vmem>>, vector<4x8x8xf32>
    %c0_2 = arith.constant 0 : index
    %c0_3 = arith.constant 0 : index
    %c0_4 = arith.constant 0 : index
    %1 = vector.load %arg2[%c0_2, %c0_3, %c0_4] : memref<4x8x8xf32, #tpu.memory_space<vmem>>, vector<4x8x8xf32>
    %c0_5 = arith.constant 0 : index
    %c0_6 = arith.constant 0 : index
    %c0_7 = arith.constant 0 : index
    %2 = vector.load %arg3[%c0_5, %c0_6, %c0_7] : memref<4x8x8xf32, #tpu.memory_space<vmem>>, vector<4x8x8xf32>
    %cst = arith.constant dense<0.000000e+00> : vector<4x8x8xf32>
    %3 = tpu.matmul %0, %1, %cst {dimension_numbers = #tpu.dot_dimension_numbers<[2], [2], [1], [1], [0, 0, 0, 1, 1, 1], [0], [0]>} : vector<4x8x8xf32>, vector<4x8x8xf32>, vector<4x8x8xf32> -> vector<4x8x8xf32>
    %cst_8 = arith.constant dense<0xFF800000> : vector<4x8xf32>
    %4 = vector.multi_reduction <maximumf>, %3, %cst_8 [2] : vector<4x8x8xf32> to vector<4x8xf32>
    %5 = vector.shape_cast %4 : vector<4x8xf32> to vector<4x8x1xf32>
    %6 = vector.broadcast %5 : vector<4x8x1xf32> to vector<4x8x8xf32>
    %7 = arith.subf %3, %6 : vector<4x8x8xf32>
    %8 = math.exp %7 : vector<4x8x8xf32>
    %cst_9 = arith.constant dense<0.000000e+00> : vector<4x8xf32>
    %9 = vector.multi_reduction <add>, %8, %cst_9 [2] : vector<4x8x8xf32> to vector<4x8xf32>
    %10 = vector.shape_cast %9 : vector<4x8xf32> to vector<4x8x1xf32>
    %11 = tpu.reciprocal %10 {approx = true} : vector<4x8x1xf32> -> vector<4x8x1xf32>
    %12 = vector.broadcast %11 : vector<4x8x1xf32> to vector<4x8x8xf32>
    %13 = arith.mulf %8, %12 : vector<4x8x8xf32>
    %cst_10 = arith.constant dense<0.000000e+00> : vector<4x8x8xf32>
    %14 = tpu.matmul %13, %2, %cst_10 {dimension_numbers = #tpu.dot_dimension_numbers<[2], [1], [1], [2], [0, 0, 0, 1, 1, 2], [0], [0]>} : vector<4x8x8xf32>, vector<4x8x8xf32>, vector<4x8x8xf32> -> vector<4x8x8xf32>
    %c0_11 = arith.constant 0 : index
    %c0_12 = arith.constant 0 : index
    %c0_13 = arith.constant 0 : index
    %15 = vector.load %arg4[%c0_11, %c0_12, %c0_13] : memref<4x8x8xf32, #tpu.memory_space<vmem>>, vector<4x8x8xf32>
    tpu.vector_store %arg4[%c0_11, %c0_12, %c0_13], %14 {strides = array<i32>} : memref<4x8x8xf32, #tpu.memory_space<vmem>>, vector<4x8x8xf32>,
    return
  }
  func.func @transform_0(%arg0: i32) -> (i32, i32, i32) {
    %c0_i32 = arith.constant 0 : i32
    %c0_i32_0 = arith.constant 0 : i32
    %c0_i32_1 = arith.constant 0 : i32
    return %arg0, %c0_i32, %c0_i32_0 : i32, i32, i32
  }
  func.func @transform_1(%arg0: i32) -> (i32, i32, i32) {
    %c0_i32 = arith.constant 0 : i32
    %c0_i32_0 = arith.constant 0 : i32
    %c0_i32_1 = arith.constant 0 : i32
    return %arg0, %c0_i32, %c0_i32_0 : i32, i32, i32
  }
  func.func @transform_2(%arg0: i32) -> (i32, i32, i32) {
    %c0_i32 = arith.constant 0 : i32
    %c0_i32_0 = arith.constant 0 : i32
    %c0_i32_1 = arith.constant 0 : i32
    return %arg0, %c0_i32, %c0_i32_0 : i32, i32, i32
  }
  func.func @transform_3(%arg0: i32) -> (i32, i32, i32) {
    %c0_i32 = arith.constant 0 : i32
    %c0_i32_0 = arith.constant 0 : i32
    %c0_i32_1 = arith.constant 0 : i32
    return %arg0, %c0_i32, %c0_i32_0 : i32, i32, i32
  }
}

module attributes {stable_mosaic.version = 11 : i64} {
  func.func @_out_kernel(%arg0: i32, %arg1: memref<8x32xf32, #tpu.memory_space<vmem>>, %arg2: memref<8x32xf32, #tpu.memory_space<vmem>>, %arg3: memref<32x32xf32, #tpu.memory_space<vmem>>, %arg4: memref<1x32xf32, #tpu.memory_space<vmem>>, %arg5: memref<1x32xf32, #tpu.memory_space<vmem>>, %arg6: memref<1x32xf32, #tpu.memory_space<vmem>>, %arg7: memref<8x32xf32, #tpu.memory_space<vmem>>) attributes {dimension_semantics = [#tpu.dimension_semantics<parallel>], iteration_bounds = array<i64: 2>, scalar_prefetch = 0 : i64, scratch_operands = 0 : i64, tpu.core_type = #tpu.core_type<tc>, window_params = [{transform_indices = @transform_0, window_bounds = array<i64: 8, 32>}, {transform_indices = @transform_1, window_bounds = array<i64: 8, 32>}, {pipeline_mode = #tpu.pipeline_mode<synchronous>, transform_indices = @transform_2, window_bounds = array<i64: 32, 32>}, {pipeline_mode = #tpu.pipeline_mode<synchronous>, transform_indices = @transform_3, window_bounds = array<i64: 1, 32>}, {pipeline_mode = #tpu.pipeline_mode<synchronous>, transform_indices = @transform_4, window_bounds = array<i64: 1, 32>}, {pipeline_mode = #tpu.pipeline_mode<synchronous>, transform_indices = @transform_5, window_bounds = array<i64: 1, 32>}, {transform_indices = @transform_6, window_bounds = array<i64: 8, 32>}]} {
    %c0 = arith.constant 0 : index
    %c0_0 = arith.constant 0 : index
    %0 = vector.load %arg1[%c0, %c0_0] : memref<8x32xf32, #tpu.memory_space<vmem>>, vector<8x32xf32>
    %c0_1 = arith.constant 0 : index
    %c0_2 = arith.constant 0 : index
    %1 = vector.load %arg3[%c0_1, %c0_2] : memref<32x32xf32, #tpu.memory_space<vmem>>, vector<32x32xf32>
    %cst = arith.constant dense<0.000000e+00> : vector<8x32xf32>
    %2 = tpu.matmul %0, %1, %cst {dimension_numbers = #tpu.dot_dimension_numbers<[1], [0], [0], [1], [0, 0, 1, 1], [], []>} : vector<8x32xf32>, vector<32x32xf32>, vector<8x32xf32> -> vector<8x32xf32>
    %c0_3 = arith.constant 0 : index
    %c0_4 = arith.constant 0 : index
    %3 = vector.load %arg4[%c0_3, %c0_4] : memref<1x32xf32, #tpu.memory_space<vmem>>, vector<1x32xf32>
    %4 = vector.broadcast %3 : vector<1x32xf32> to vector<8x32xf32>
    %5 = arith.addf %2, %4 : vector<8x32xf32>
    %c0_5 = arith.constant 0 : index
    %c0_6 = arith.constant 0 : index
    %6 = vector.load %arg2[%c0_5, %c0_6] : memref<8x32xf32, #tpu.memory_space<vmem>>, vector<8x32xf32>
    %7 = arith.addf %5, %6 : vector<8x32xf32>
    %cst_7 = arith.constant dense<0.000000e+00> : vector<8xf32>
    %8 = vector.multi_reduction <add>, %7, %cst_7 [1] : vector<8x32xf32> to vector<8xf32>
    %9 = vector.shape_cast %8 : vector<8xf32> to vector<8x1xf32>
    %cst_8 = arith.constant 3.200000e+01 : f32
    %10 = vector.broadcast %cst_8 : f32 to vector<8x1xf32>
    %11 = arith.divf %9, %10 : vector<8x1xf32>
    %12 = vector.broadcast %11 : vector<8x1xf32> to vector<8x32xf32>
    %13 = arith.subf %7, %12 : vector<8x32xf32>
    %14 = arith.mulf %13, %13 : vector<8x32xf32>
    %cst_9 = arith.constant dense<0.000000e+00> : vector<8xf32>
    %15 = vector.multi_reduction <add>, %14, %cst_9 [1] : vector<8x32xf32> to vector<8xf32>
    %16 = vector.shape_cast %15 : vector<8xf32> to vector<8x1xf32>
    %cst_10 = arith.constant 3.200000e+01 : f32
    %17 = vector.broadcast %cst_10 : f32 to vector<8x1xf32>
    %18 = arith.divf %16, %17 : vector<8x1xf32>
    %19 = vector.broadcast %11 : vector<8x1xf32> to vector<8x32xf32>
    %20 = arith.subf %7, %19 : vector<8x32xf32>
    %cst_11 = arith.constant 9.99999974E-6 : f32
    %21 = vector.broadcast %cst_11 : f32 to vector<8x1xf32>
    %22 = arith.addf %18, %21 : vector<8x1xf32>
    %23 = math.rsqrt %22 : vector<8x1xf32>
    %24 = vector.broadcast %23 : vector<8x1xf32> to vector<8x32xf32>
    %25 = arith.mulf %20, %24 : vector<8x32xf32>
    %c0_12 = arith.constant 0 : index
    %c0_13 = arith.constant 0 : index
    %26 = vector.load %arg5[%c0_12, %c0_13] : memref<1x32xf32, #tpu.memory_space<vmem>>, vector<1x32xf32>
    %27 = vector.broadcast %26 : vector<1x32xf32> to vector<8x32xf32>
    %28 = arith.mulf %25, %27 : vector<8x32xf32>
    %c0_14 = arith.constant 0 : index
    %c0_15 = arith.constant 0 : index
    %29 = vector.load %arg6[%c0_14, %c0_15] : memref<1x32xf32, #tpu.memory_space<vmem>>, vector<1x32xf32>
    %30 = vector.broadcast %29 : vector<1x32xf32> to vector<8x32xf32>
    %31 = arith.addf %28, %30 : vector<8x32xf32>
    %c0_16 = arith.constant 0 : index
    %c0_17 = arith.constant 0 : index
    %32 = vector.load %arg7[%c0_16, %c0_17] : memref<8x32xf32, #tpu.memory_space<vmem>>, vector<8x32xf32>
    tpu.vector_store %arg7[%c0_16, %c0_17], %31 {strides = array<i32>} : memref<8x32xf32, #tpu.memory_space<vmem>>, vector<8x32xf32>,
    return
  }
  func.func @transform_0(%arg0: i32) -> (i32, i32) {
    %c0_i32 = arith.constant 0 : i32
    %c0_i32_0 = arith.constant 0 : i32
    return %arg0, %c0_i32 : i32, i32
  }
  func.func @transform_1(%arg0: i32) -> (i32, i32) {
    %c0_i32 = arith.constant 0 : i32
    %c0_i32_0 = arith.constant 0 : i32
    return %arg0, %c0_i32 : i32, i32
  }
  func.func @transform_2(%arg0: i32) -> (i32, i32) {
    %c0_i32 = arith.constant 0 : i32
    %c0_i32_0 = arith.constant 0 : i32
    %c0_i32_1 = arith.constant 0 : i32
    return %c0_i32, %c0_i32_0 : i32, i32
  }
  func.func @transform_3(%arg0: i32) -> (i32, i32) {
    %c0_i32 = arith.constant 0 : i32
    %c0_i32_0 = arith.constant 0 : i32
    %c0_i32_1 = arith.constant 0 : i32
    return %c0_i32, %c0_i32_0 : i32, i32
  }
  func.func @transform_4(%arg0: i32) -> (i32, i32) {
    %c0_i32 = arith.constant 0 : i32
    %c0_i32_0 = arith.constant 0 : i32
    %c0_i32_1 = arith.constant 0 : i32
    return %c0_i32, %c0_i32_0 : i32, i32
  }
  func.func @transform_5(%arg0: i32) -> (i32, i32) {
    %c0_i32 = arith.constant 0 : i32
    %c0_i32_0 = arith.constant 0 : i32
    %c0_i32_1 = arith.constant 0 : i32
    return %c0_i32, %c0_i32_0 : i32, i32
  }
  func.func @transform_6(%arg0: i32) -> (i32, i32) {
    %c0_i32 = arith.constant 0 : i32
    %c0_i32_0 = arith.constant 0 : i32
    return %arg0, %c0_i32 : i32, i32
  }
}

</mosaic_0001>

<llo_original>
// kernel: multi_head_attention.3
$region0: #{multi_head_attention.3}
  #allocation0 [shape = 'u32[]', space=smem, size = 0x4, offset = 0x4, fixed_abs, tag = 'smem constant byte address 0x4 - core index']
  #allocation1 [shape = 'u32[144,128]{1,0:T(1,128)}', space=vmem, size = 0x12000, scoped, tag = 'internal scratch']
  %s0 = inlined_call_operand.hbm [shape: f32[16,32], index: 0, kind: input, shape index: {}]
  %s1 = inlined_call_operand.hbm [shape: f32[32,32], index: 1, kind: input, shape index: {}]
  %s2 = inlined_call_operand.hbm [shape: f32[32,32], index: 2, kind: input, shape index: {}]
  %s3 = inlined_call_operand.hbm [shape: f32[32,32], index: 3, kind: input, shape index: {}]
  %s4 = inlined_call_operand.vmem [shape: f32[1,32], index: 4, kind: input, shape index: {}]
  %s5 = inlined_call_operand.vmem [shape: f32[1,32], index: 5, kind: input, shape index: {}]
  %s6 = inlined_call_operand.vmem [shape: f32[1,32], index: 6, kind: input, shape index: {}]
  %s7 = inlined_call_operand.vmem [shape: f32[16,32], index: 7, kind: output, shape index: {0}]
  %s8 = inlined_call_operand.vmem [shape: f32[16,32], index: 8, kind: output, shape index: {1}]
  %s9 = inlined_call_operand.vmem [shape: f32[16,32], index: 9, kind: output, shape index: {2}]
  %10 = xla_tuple %s7, %s8, %s9
  %s11 = sld [smem:[#allocation0]]
  $region93: #{multi_head_attention.3} parent=0
    _
  %s13 = ssub.s32 1, %s11
  %s14 = scalar_select 0, %s13, %s11
  $region1: #{multi_head_attention.3} parent=0
    #allocation2 [shape = 'u8[8192]{0}', space=vmem, size = 0x2000, scoped, tag = 'input window, operand 0']
    #allocation3 [shape = 's32[2]{0}', space=sflag, size = 0x8, scoped, tag = 'scoped memory for multi_head_attention.3']
    #allocation4 [shape = 'u8[16384]{0}', space=vmem, size = 0x4000, scoped, tag = 'input window, operand 1, single buffered']
    #allocation5 [shape = 's32[1]{0}', space=sflag, size = 0x4, scoped, tag = 'scoped memory for multi_head_attention.3']
    #allocation6 [shape = 'u8[16384]{0}', space=vmem, size = 0x4000, scoped, tag = 'input window, operand 2, single buffered']
    #allocation7 [shape = 'u8[16384]{0}', space=vmem, size = 0x4000, scoped, tag = 'input window, operand 3, single buffered']
    #allocation8 [shape = 's32[1]{0}', space=sflag, size = 0x4, scoped, tag = 'scoped memory for multi_head_attention.3']
    %15 = vsyncpa [#allocation3], 0
    %s16 = scalar_lea.sflag [#allocation3], 1
    %17 = vsyncpa %s16, 0
    %18 = vsyncpa [#allocation5], 0
    %19 = vsyncpa [#allocation8], 0
    loop: start=0, step=1, limit=4
    $region2: #{multi_head_attention.3} parent=1 // loop_pre_header
      _
    $region3: #{multi_head_attention.3} parent=1 // loop_header
      %s21 = sphi 0, %s25
      %p22 = scmp.ge.s32.totalorder %s21, 4
      %s31 = sphi 0, %s33
      %s34 = sphi 0, %s31
      %s35 = sphi 0, %s34
      %s51 = sphi 0, %s35
      %s55 = sphi 0, %s55
      %s57 = sphi 0, %s55
      %s58 = sphi 0, %s57
      %s72 = sphi 0, %s58
      %s76 = sphi 0, %s76
      %s78 = sphi 0, %s76
      %s79 = sphi 0, %s78
      %s93 = sphi 0, %s79
      %s97 = sphi 0, %s97
      %s99 = sphi 0, %s97
      %s100 = sphi 0, %s99
      %s114 = sphi 0, %s100
      %s118 = sphi 0, %s118
      %s120 = sphi 0, %s118
      %s121 = sphi 0, %s120
      %s135 = sphi 0, %s121
      %s139 = sphi 0, %s139
      %s141 = sphi 0, %s139
      %s142 = sphi 0, %s141
      %s156 = sphi 0, %s142
      %s160 = sphi 0, %s160
      %s162 = sphi 0, %s160
      %s163 = sphi 0, %s162
      %s177 = sphi 0, %s163
      %s183 = sphi 0, %s185
      %s186 = sphi 0, %s183
      %s187 = sphi 0, %s186
      %s203 = sphi 0, %s187
      %s209 = sphi 0, %s211
      %s212 = sphi 0, %s209
      %s213 = sphi 0, %s212
      %s229 = sphi 0, %s213
      %s235 = sphi 0, %s237
      %s238 = sphi 0, %s235
      %s239 = sphi 0, %s238
      %s255 = sphi 0, %s239
    $region4: #{multi_head_attention.3} parent=1 // loop_header_branch
      %24 = sbr.rel (%p22) target = $region8
    $region5: #{multi_head_attention.3} parent=1 // loop_body
      %s26 = ssub.s32 %s21, 1
      %s27 = ssub.s32 %s21, 2
      %s28 = sadd.s32 %s21, 1
      %s29 = ssub.s32 %s21, %s28
      %p30 = scmp.eq.s32.totalorder %s29, 0
      %s32 = sadd.s32 %s31, 1
      %s33 = scalar_select %p30, %s31, %s32
      %p36 = pneg %p30
      %p37 = scmp.eq.s32.totalorder %s21, 1
      %p38 = por %p36, %p37
      %p39 = scmp.ne.s32.totalorder %s31, %s34
      %p40 = scmp.eq.s32.totalorder %s21, 0
      %p41 = por %p39, %p40
      %p42 = scmp.ne.s32.totalorder %s31, %s34
      %p43 = scmp.eq.s32.totalorder %s26, 1
      %p44 = por %p42, %p43
      %p45 = scmp.ne.s32.totalorder %s34, %s35
      %p46 = scmp.eq.s32.totalorder %s26, 0
      %p47 = por %p45, %p46
      %p48 = scmp.ne.s32.totalorder %s34, %s35
      %p49 = scmp.eq.s32.totalorder %s27, 1
      %p50 = por %p48, %p49
      %p52 = scmp.ne.s32.totalorder %s35, %s51
      %p53 = scmp.eq.s32.totalorder %s27, 0
      %p54 = por %p52, %p53
      %s56 = sadd.s32 %s55, 1
      %p59 = scmp.eq.s32.totalorder %s21, 1
      %p60 = scmp.ne.s32.totalorder %s55, %s57
      %p61 = scmp.eq.s32.totalorder %s21, 0
      %p62 = por %p60, %p61
      %p63 = scmp.ne.s32.totalorder %s55, %s57
      %p64 = scmp.eq.s32.totalorder %s26, 1
      %p65 = por %p63, %p64
      %p66 = scmp.ne.s32.totalorder %s57, %s58
      %p67 = scmp.eq.s32.totalorder %s26, 0
      %p68 = por %p66, %p67
      %p69 = scmp.ne.s32.totalorder %s57, %s58
      %p70 = scmp.eq.s32.totalorder %s27, 1
      %p71 = por %p69, %p70
      %p73 = scmp.ne.s32.totalorder %s58, %s72
      %p74 = scmp.eq.s32.totalorder %s27, 0
      %p75 = por %p73, %p74
      %s77 = sadd.s32 %s76, 1
      %p80 = scmp.eq.s32.totalorder %s21, 1
      %p81 = scmp.ne.s32.totalorder %s76, %s78
      %p82 = scmp.eq.s32.totalorder %s21, 0
      %p83 = por %p81, %p82
      %p84 = scmp.ne.s32.totalorder %s76, %s78
      %p85 = scmp.eq.s32.totalorder %s26, 1
      %p86 = por %p84, %p85
      %p87 = scmp.ne.s32.totalorder %s78, %s79
      %p88 = scmp.eq.s32.totalorder %s26, 0
      %p89 = por %p87, %p88
      %p90 = scmp.ne.s32.totalorder %s78, %s79
      %p91 = scmp.eq.s32.totalorder %s27, 1
      %p92 = por %p90, %p91
      %p94 = scmp.ne.s32.totalorder %s79, %s93
      %p95 = scmp.eq.s32.totalorder %s27, 0
      %p96 = por %p94, %p95
      %s98 = sadd.s32 %s97, 1
      %p101 = scmp.eq.s32.totalorder %s21, 1
      %p102 = scmp.ne.s32.totalorder %s97, %s99
      %p103 = scmp.eq.s32.totalorder %s21, 0
      %p104 = por %p102, %p103
      %p105 = scmp.ne.s32.totalorder %s97, %s99
      %p106 = scmp.eq.s32.totalorder %s26, 1
      %p107 = por %p105, %p106
      %p108 = scmp.ne.s32.totalorder %s99, %s100
      %p109 = scmp.eq.s32.totalorder %s26, 0
      %p110 = por %p108, %p109
      %p111 = scmp.ne.s32.totalorder %s99, %s100
      %p112 = scmp.eq.s32.totalorder %s27, 1
      %p113 = por %p111, %p112
      %p115 = scmp.ne.s32.totalorder %s100, %s114
      %p116 = scmp.eq.s32.totalorder %s27, 0
      %p117 = por %p115, %p116
      %s119 = sadd.s32 %s118, 1
      %p122 = scmp.eq.s32.totalorder %s21, 1
      %p123 = scmp.ne.s32.totalorder %s118, %s120
      %p124 = scmp.eq.s32.totalorder %s21, 0
      %p125 = por %p123, %p124
      %p126 = scmp.ne.s32.totalorder %s118, %s120
      %p127 = scmp.eq.s32.totalorder %s26, 1
      %p128 = por %p126, %p127
      %p129 = scmp.ne.s32.totalorder %s120, %s121
      %p130 = scmp.eq.s32.totalorder %s26, 0
      %p131 = por %p129, %p130
      %p132 = scmp.ne.s32.totalorder %s120, %s121
      %p133 = scmp.eq.s32.totalorder %s27, 1
      %p134 = por %p132, %p133
      %p136 = scmp.ne.s32.totalorder %s121, %s135
      %p137 = scmp.eq.s32.totalorder %s27, 0
      %p138 = por %p136, %p137
      %s140 = sadd.s32 %s139, 1
      %p143 = scmp.eq.s32.totalorder %s21, 1
      %p144 = scmp.ne.s32.totalorder %s139, %s141
      %p145 = scmp.eq.s32.totalorder %s21, 0
      %p146 = por %p144, %p145
      %p147 = scmp.ne.s32.totalorder %s139, %s141
      %p148 = scmp.eq.s32.totalorder %s26, 1
      %p149 = por %p147, %p148
      %p150 = scmp.ne.s32.totalorder %s141, %s142
      %p151 = scmp.eq.s32.totalorder %s26, 0
      %p152 = por %p150, %p151
      %p153 = scmp.ne.s32.totalorder %s141, %s142
      %p154 = scmp.eq.s32.totalorder %s27, 1
      %p155 = por %p153, %p154
      %p157 = scmp.ne.s32.totalorder %s142, %s156
      %p158 = scmp.eq.s32.totalorder %s27, 0
      %p159 = por %p157, %p158
      %s161 = sadd.s32 %s160, 1
      %p164 = scmp.eq.s32.totalorder %s21, 1
      %p165 = scmp.ne.s32.totalorder %s160, %s162
      %p166 = scmp.eq.s32.totalorder %s21, 0
      %p167 = por %p165, %p166
      %p168 = scmp.ne.s32.totalorder %s160, %s162
      %p169 = scmp.eq.s32.totalorder %s26, 1
      %p170 = por %p168, %p169
      %p171 = scmp.ne.s32.totalorder %s162, %s163
      %p172 = scmp.eq.s32.totalorder %s26, 0
      %p173 = por %p171, %p172
      %p174 = scmp.ne.s32.totalorder %s162, %s163
      %p175 = scmp.eq.s32.totalorder %s27, 1
      %p176 = por %p174, %p175
      %p178 = scmp.ne.s32.totalorder %s163, %s177
      %p179 = scmp.eq.s32.totalorder %s27, 0
      %p180 = por %p178, %p179
      %s181 = ssub.s32 %s21, %s28
      %p182 = scmp.eq.s32.totalorder %s181, 0
      %s184 = sadd.s32 %s183, 1
      %s185 = scalar_select %p182, %s183, %s184
      %p188 = pneg %p182
      %p189 = scmp.eq.s32.totalorder %s21, 1
      %p190 = por %p188, %p189
      %p191 = scmp.ne.s32.totalorder %s183, %s186
      %p192 = scmp.eq.s32.totalorder %s21, 0
      %p193 = por %p191, %p192
      %p194 = scmp.ne.s32.totalorder %s183, %s186
      %p195 = scmp.eq.s32.totalorder %s26, 1
      %p196 = por %p194, %p195
      %p197 = scmp.ne.s32.totalorder %s186, %s187
      %p198 = scmp.eq.s32.totalorder %s26, 0
      %p199 = por %p197, %p198
      %p200 = scmp.ne.s32.totalorder %s186, %s187
      %p201 = scmp.eq.s32.totalorder %s27, 1
      %p202 = por %p200, %p201
      %p204 = scmp.ne.s32.totalorder %s187, %s203
      %p205 = scmp.eq.s32.totalorder %s27, 0
      %p206 = por %p204, %p205
      %s207 = ssub.s32 %s21, %s28
      %p208 = scmp.eq.s32.totalorder %s207, 0
      %s210 = sadd.s32 %s209, 1
      %s211 = scalar_select %p208, %s209, %s210
      %p214 = pneg %p208
      %p215 = scmp.eq.s32.totalorder %s21, 1
      %p216 = por %p214, %p215
      %p217 = scmp.ne.s32.totalorder %s209, %s212
      %p218 = scmp.eq.s32.totalorder %s21, 0
      %p219 = por %p217, %p218
      %p220 = scmp.ne.s32.totalorder %s209, %s212
      %p221 = scmp.eq.s32.totalorder %s26, 1
      %p222 = por %p220, %p221
      %p223 = scmp.ne.s32.totalorder %s212, %s213
      %p224 = scmp.eq.s32.totalorder %s26, 0
      %p225 = por %p223, %p224
      %p226 = scmp.ne.s32.totalorder %s212, %s213
      %p227 = scmp.eq.s32.totalorder %s27, 1
      %p228 = por %p226, %p227
      %p230 = scmp.ne.s32.totalorder %s213, %s229
      %p231 = scmp.eq.s32.totalorder %s27, 0
      %p232 = por %p230, %p231
      %s233 = ssub.s32 %s21, %s28
      %p234 = scmp.eq.s32.totalorder %s233, 0
      %s236 = sadd.s32 %s235, 1
      %s237 = scalar_select %p234, %s235, %s236
      %p240 = pneg %p234
      %p241 = scmp.eq.s32.totalorder %s21, 1
      %p242 = por %p240, %p241
      %p243 = scmp.ne.s32.totalorder %s235, %s238
      %p244 = scmp.eq.s32.totalorder %s21, 0
      %p245 = por %p243, %p244
      %p246 = scmp.ne.s32.totalorder %s235, %s238
      %p247 = scmp.eq.s32.totalorder %s26, 1
      %p248 = por %p246, %p247
      %p249 = scmp.ne.s32.totalorder %s238, %s239
      %p250 = scmp.eq.s32.totalorder %s26, 0
      %p251 = por %p249, %p250
      %p252 = scmp.ne.s32.totalorder %s238, %s239
      %p253 = scmp.eq.s32.totalorder %s27, 1
      %p254 = por %p252, %p253
      %p256 = scmp.ne.s32.totalorder %s239, %s255
      %p257 = scmp.eq.s32.totalorder %s27, 0
      %p258 = por %p256, %p257
      %p259 = scmp.le.s32.totalorder 1, %s21
      %p260 = scmp.lt.s32.totalorder %s21, 3
      %p261 = pnand %p259, %p260
      %p262 = pneg %p261
      // Predicated region
      $region9: #{multi_head_attention.3} parent=5 // pred_check
        _
      $region10: #{multi_head_attention.3} parent=5 // pred_check_branch
        %264 = sbr.rel (%p261) target = $region12
      $region11: #{multi_head_attention.3} parent=5 // pred_region
        %s265 = ssub.s32 %s21, 1
        // Predicated region
        $region13: #{multi_head_attention.3} parent=11 // pred_check
          %p266 = pneg %p68
        $region14: #{multi_head_attention.3} parent=11 // pred_check_branch
          %268 = sbr.rel (%p266) target = $region16
        $region15: #{multi_head_attention.3} parent=11 // pred_region
          %s270 = ssub.s32 512, 512
          %271 = vsyncadd [#allocation5], %s270
          %s272 = sshll.u32 [#allocation4], 4
          %s273 = int_to_ptr.vmem [resolvable:$true] %s272
          %278 = dma.hbm_to_vmem [thread:$0]  %s1, 512, %s273, [#allocation5], 128, 128, 8
        $region16: #{multi_head_attention.3} parent=11 // pred_fallthru
          _
        // Predicated region
        $region17: #{multi_head_attention.3} parent=11 // pred_check
          %p279 = pneg %p89
        $region18: #{multi_head_attention.3} parent=11 // pred_check_branch
          %281 = sbr.rel (%p279) target = $region20
        $region19: #{multi_head_attention.3} parent=11 // pred_region
          %s283 = ssub.s32 512, 512
          %284 = vsyncadd [#allocation5], %s283
          %s285 = sshll.u32 [#allocation6], 4
          %s286 = int_to_ptr.vmem [resolvable:$true] %s285
          %291 = dma.hbm_to_vmem [thread:$0]  %s2, 512, %s286, [#allocation5], 128, 128, 8
        $region20: #{multi_head_attention.3} parent=11 // pred_fallthru
          _
        // Predicated region
        $region21: #{multi_head_attention.3} parent=11 // pred_check
          %p292 = pneg %p110
        $region22: #{multi_head_attention.3} parent=11 // pred_check_branch
          %294 = sbr.rel (%p292) target = $region24
        $region23: #{multi_head_attention.3} parent=11 // pred_region
          %s296 = ssub.s32 512, 512
          %297 = vsyncadd [#allocation8], %s296
          %s298 = sshll.u32 [#allocation7], 4
          %s299 = int_to_ptr.vmem [resolvable:$true] %s298
          %304 = dma.hbm_to_vmem [thread:$0]  %s3, 512, %s299, [#allocation8], 128, 128, 8
        $region24: #{multi_head_attention.3} parent=11 // pred_fallthru
          _
        // Predicated region
        $region25: #{multi_head_attention.3} parent=11 // pred_check
          %p305 = pneg %p131
        $region26: #{multi_head_attention.3} parent=11 // pred_check_branch
          %307 = sbr.rel (%p305) target = $region28
        $region27: #{multi_head_attention.3} parent=11 // pred_region
          _
        $region28: #{multi_head_attention.3} parent=11 // pred_fallthru
          _
        // Predicated region
        $region29: #{multi_head_attention.3} parent=11 // pred_check
          %p308 = pneg %p152
        $region30: #{multi_head_attention.3} parent=11 // pred_check_branch
          %310 = sbr.rel (%p308) target = $region32
        $region31: #{multi_head_attention.3} parent=11 // pred_region
          _
        $region32: #{multi_head_attention.3} parent=11 // pred_fallthru
          _
        // Predicated region
        $region33: #{multi_head_attention.3} parent=11 // pred_check
          %p311 = pneg %p173
        $region34: #{multi_head_attention.3} parent=11 // pred_check_branch
          %313 = sbr.rel (%p311) target = $region36
        $region35: #{multi_head_attention.3} parent=11 // pred_region
          _
        $region36: #{multi_head_attention.3} parent=11 // pred_fallthru
          _
      $region12: #{multi_head_attention.3} parent=5 // pred_fallthru
        _
      %p314 = scmp.lt.s32.totalorder %s21, 2
      // Predicated region
      $region37: #{multi_head_attention.3} parent=5 // pred_check
        %p315 = pneg %p314
      $region38: #{multi_head_attention.3} parent=5 // pred_check_branch
        %317 = sbr.rel (%p315) target = $region40
      $region39: #{multi_head_attention.3} parent=5 // pred_region
        // Predicated region
        $region41: #{multi_head_attention.3} parent=39 // pred_check
          %p318 = pneg %p41
        $region42: #{multi_head_attention.3} parent=39 // pred_check_branch
          %320 = sbr.rel (%p318) target = $region44
        $region43: #{multi_head_attention.3} parent=39 // pred_region
          %s321 = sand.u32 %s31, 1
          %s322 = scalar_lea.sflag [#allocation3], %s321
          %s323 = sand.u32 %s31, 1
          %s324 = smul.addr %s323, 8
          %s325 = scalar_lea.vmem [#allocation2], %s324
          %s327 = ssub.s32 128, 128
          %328 = vsyncadd %s322, %s327
          %s329 = smul.addr %s21, 128
          %s330 = scalar_lea.hbm %s0, %s329
          %s332 = sshll.u32 %s325, 4
          %s333 = int_to_ptr.vmem [resolvable:$true] %s332
          %335 = dma.hbm_to_vmem [thread:$0]  %s330, 128, %s333, %s322
        $region44: #{multi_head_attention.3} parent=39 // pred_fallthru
          _
      $region40: #{multi_head_attention.3} parent=5 // pred_fallthru
        _
      %p336 = scmp.le.s32.totalorder 1, %s21
      %p337 = scmp.lt.s32.totalorder %s21, 3
      %p338 = pnand %p336, %p337
      %p339 = pneg %p338
      // Predicated region
      $region45: #{multi_head_attention.3} parent=5 // pred_check
        _
      $region46: #{multi_head_attention.3} parent=5 // pred_check_branch
        %341 = sbr.rel (%p338) target = $region48
      $region47: #{multi_head_attention.3} parent=5 // pred_region
        %s342 = ssub.s32 %s21, 1
        %s343 = sand.u32 %s34, 1
        %s344 = scalar_lea.sflag [#allocation3], %s343
        %s345 = sand.u32 %s34, 1
        %s346 = smul.addr %s345, 8
        %s347 = scalar_lea.vmem [#allocation2], %s346
        // Predicated region
        $region49: #{multi_head_attention.3} parent=47 // pred_check
          %p348 = pneg %p47
        $region50: #{multi_head_attention.3} parent=47 // pred_check_branch
          %350 = sbr.rel (%p348) target = $region52
        $region51: #{multi_head_attention.3} parent=47 // pred_region
          %351 = dma.done %s344, 128
        $region52: #{multi_head_attention.3} parent=47 // pred_fallthru
          _
        // Predicated region
        $region53: #{multi_head_attention.3} parent=47 // pred_check
          %p352 = pneg %p68
        $region54: #{multi_head_attention.3} parent=47 // pred_check_branch
          %354 = sbr.rel (%p352) target = $region56
        $region55: #{multi_head_attention.3} parent=47 // pred_region
          %355 = dma.done [#allocation5], 512
        $region56: #{multi_head_attention.3} parent=47 // pred_fallthru
          _
        // Predicated region
        $region57: #{multi_head_attention.3} parent=47 // pred_check
          %p356 = pneg %p89
        $region58: #{multi_head_attention.3} parent=47 // pred_check_branch
          %358 = sbr.rel (%p356) target = $region60
        $region59: #{multi_head_attention.3} parent=47 // pred_region
          %359 = dma.done [#allocation5], 512
        $region60: #{multi_head_attention.3} parent=47 // pred_fallthru
          _
        // Predicated region
        $region61: #{multi_head_attention.3} parent=47 // pred_check
          %p360 = pneg %p110
        $region62: #{multi_head_attention.3} parent=47 // pred_check_branch
          %362 = sbr.rel (%p360) target = $region64
        $region63: #{multi_head_attention.3} parent=47 // pred_region
          %363 = dma.done [#allocation8], 512
        $region64: #{multi_head_attention.3} parent=47 // pred_fallthru
          _
        %s364 = sand.u32 %s34, 1
        %s365 = scalar_lea.sflag [#allocation3], %s364
        %s366 = sand.u32 %s34, 1
        %s367 = smul.addr %s366, 8
        %s368 = scalar_lea.vmem [#allocation2], %s367
        %p369 = pneg %p47
        %p370 = pneg %p44
        %p371 = pneg %p68
        %p372 = pneg %p65
        %p373 = pneg %p89
        %p374 = pneg %p86
        %p375 = pneg %p110
        %p376 = pneg %p107
        %p377 = pneg %p131
        %p378 = pneg %p128
        %p379 = pneg %p152
        %p380 = pneg %p149
        %p381 = pneg %p173
        %p382 = pneg %p170
        %p383 = pneg %p199
        %p384 = pneg %p196
        %p385 = scmp.lt.s32.totalorder %s26, 1
        %s386 = scalar_select %p385, %s26, 1
        %s387 = smul.addr %s386, 8
        %s388 = scalar_lea.vmem %s7, %s387
        %p389 = pneg %p225
        %p390 = pneg %p222
        %p391 = scmp.lt.s32.totalorder %s26, 1
        %s392 = scalar_select %p391, %s26, 1
        %s393 = smul.addr %s392, 8
        %s394 = scalar_lea.vmem %s8, %s393
        %p395 = pneg %p251
        %p396 = pneg %p248
        %p397 = scmp.lt.s32.totalorder %s26, 1
        %s398 = scalar_select %p397, %s26, 1
        %s399 = smul.addr %s398, 8
        %s400 = scalar_lea.vmem %s9, %s399
        %p401 = scmp.lt.s32.totalorder %s26, 1
        %s402 = scalar_select %p401, %s26, 1
        %s403 = smul.addr %s402, 8
        %s404 = scalar_lea.vmem %s7, %s403
        %p405 = scmp.lt.s32.totalorder %s26, 1
        %s406 = scalar_select %p405, %s26, 1
        %s407 = smul.addr %s406, 8
        %s408 = scalar_lea.vmem %s8, %s407
        %p409 = scmp.lt.s32.totalorder %s26, 1
        %s410 = scalar_select %p409, %s26, 1
        %s411 = smul.addr %s410, 8
        %s412 = scalar_lea.vmem %s9, %s411
        %v413 = vld [vmem:[%s347] sm:$0xff]
        %v414 = vld [vmem:[#allocation4] sm:$0xff]
        %v415 = vld [vmem:[#allocation4 + $0x8] sm:$0xff]
        %v416 = vld [vmem:[#allocation4 + $0x10] sm:$0xff]
        %v417 = vld [vmem:[#allocation4 + $0x18] sm:$0xff]
        %v418 = vld [vmem:[%s4] sm:$0x1]
        %v420 = vlaneseq
        %v421 = vshrl.u32 %v420, 7
        %v422 = vsub.s32 0, %v421
        %v423 = vrot.slane %v418, %v422
        %vm425 = vcmask 261120
        %v427 = vsel %vm425, %v413, 0
        %429 = vmatprep.subr.mxu0 0.0
        %430 = vmatpush1.msra.mxu0 0.0
        %431 = vmatprep.subr.mxu0 0.0
        %432 = vmatpush1.msra.mxu0 0.0
        %433 = vmatprep.subr.mxu0 0.0
        %434 = vmatpush1.msra.mxu0 0.0
        %435 = vmatprep.subr.mxu0 0.0
        %436 = vmatpush1.msra.mxu0 0.0
        %437 = vmatprep.subr.mxu0 0.0
        %438 = vmatpush1.msra.mxu0 0.0
        %439 = vmatprep.subr.mxu0 0.0
        %440 = vmatpush1.msra.mxu0 0.0
        %441 = vmatprep.subr.mxu0 0.0
        %442 = vmatpush1.msra.mxu0 0.0
        %443 = vmatprep.subr.mxu0 0.0
        %444 = vmatpush1.msra.mxu0 0.0
        %445 = vmatprep.subr.mxu0 0.0
        %446 = vmatpush1.msra.mxu0 0.0
        %447 = vmatprep.subr.mxu0 0.0
        %448 = vmatpush1.msra.mxu0 0.0
        %449 = vmatprep.subr.mxu0 0.0
        %450 = vmatpush1.msra.mxu0 0.0
        %451 = vmatprep.subr.mxu0 0.0
        %452 = vmatpush1.msra.mxu0 0.0
        %453 = vmatprep.subr.mxu0 0.0
        %454 = vmatpush1.msra.mxu0 %v417
        %455 = vmatprep.subr.mxu0 0.0
        %456 = vmatpush1.msra.mxu0 %v416
        %457 = vmatprep.subr.mxu0 0.0
        %458 = vmatpush1.msra.mxu0 %v415
        %459 = vmatprep.subr.mxu0 0.0
        %460 = vmatpush1.msra.mxu0 %v414
        %461 = vmatprep.subr.mxu0 0.0
        %462 = vmatpush2.msra.mxu0 0.0
        %463 = vmatprep.subr.mxu0 0.0
        %464 = vmatpush2.msra.mxu0 0.0
        %465 = vmatprep.subr.mxu0 0.0
        %466 = vmatpush2.msra.mxu0 0.0
        %467 = vmatprep.subr.mxu0 0.0
        %468 = vmatpush2.msra.mxu0 0.0
        %469 = vmatprep.subr.mxu0 0.0
        %470 = vmatpush2.msra.mxu0 0.0
        %471 = vmatprep.subr.mxu0 0.0
        %472 = vmatpush2.msra.mxu0 0.0
        %473 = vmatprep.subr.mxu0 0.0
        %474 = vmatpush2.msra.mxu0 0.0
        %475 = vmatprep.subr.mxu0 0.0
        %476 = vmatpush2.msra.mxu0 0.0
        %477 = vmatprep.subr.mxu0 0.0
        %478 = vmatpush2.msra.mxu0 0.0
        %479 = vmatprep.subr.mxu0 0.0
        %480 = vmatpush2.msra.mxu0 0.0
        %481 = vmatprep.subr.mxu0 0.0
        %482 = vmatpush2.msra.mxu0 0.0
        %483 = vmatprep.subr.mxu0 0.0
        %484 = vmatpush2.msra.mxu0 0.0
        %485 = vmatprep.subr.mxu0 0.0
        %486 = vmatpush2.msra.mxu0 0.0
        %487 = vmatprep.subr.mxu0 0.0
        %488 = vmatpush2.msra.mxu0 0.0
        %489 = vmatprep.subr.mxu0 0.0
        %490 = vmatpush2.msra.mxu0 0.0
        %491 = vmatprep.subr.mxu0 0.0
        %492 = vmatpush2.msra.mxu0 0.0
        %493 = vmatprep.mubr.f32.mxu0 0.0
        %494 = vmatmul.mubr.f32.gmra.mxu0 %v427
        %v495 = vpop.f32.mrf.mxu0
        %v496 = vadd.f32 %v423, %v495
        %v497 = vpop.f32.mrf.mxu0
        %498 = vdwg.mxu0
        %499 = vst.msk [vmem:[%s404] sm:$0xff] %vm425, %v496
        %v500 = vld [vmem:[#allocation6] sm:$0xff]
        %v501 = vld [vmem:[#allocation6 + $0x8] sm:$0xff]
        %v502 = vld [vmem:[#allocation6 + $0x10] sm:$0xff]
        %v503 = vld [vmem:[#allocation6 + $0x18] sm:$0xff]
        %v504 = vld [vmem:[%s5] sm:$0x1]
        %v506 = vlaneseq
        %v507 = vshrl.u32 %v506, 7
        %v508 = vsub.s32 0, %v507
        %v509 = vrot.slane %v504, %v508
        %511 = vmatprep.subr.mxu0 0.0
        %512 = vmatpush1.msra.mxu0 0.0
        %513 = vmatprep.subr.mxu0 0.0
        %514 = vmatpush1.msra.mxu0 0.0
        %515 = vmatprep.subr.mxu0 0.0
        %516 = vmatpush1.msra.mxu0 0.0
        %517 = vmatprep.subr.mxu0 0.0
        %518 = vmatpush1.msra.mxu0 0.0
        %519 = vmatprep.subr.mxu0 0.0
        %520 = vmatpush1.msra.mxu0 0.0
        %521 = vmatprep.subr.mxu0 0.0
        %522 = vmatpush1.msra.mxu0 0.0
        %523 = vmatprep.subr.mxu0 0.0
        %524 = vmatpush1.msra.mxu0 0.0
        %525 = vmatprep.subr.mxu0 0.0
        %526 = vmatpush1.msra.mxu0 0.0
        %527 = vmatprep.subr.mxu0 0.0
        %528 = vmatpush1.msra.mxu0 0.0
        %529 = vmatprep.subr.mxu0 0.0
        %530 = vmatpush1.msra.mxu0 0.0
        %531 = vmatprep.subr.mxu0 0.0
        %532 = vmatpush1.msra.mxu0 0.0
        %533 = vmatprep.subr.mxu0 0.0
        %534 = vmatpush1.msra.mxu0 0.0
        %535 = vmatprep.subr.mxu0 0.0
        %536 = vmatpush1.msra.mxu0 %v503
        %537 = vmatprep.subr.mxu0 0.0
        %538 = vmatpush1.msra.mxu0 %v502
        %539 = vmatprep.subr.mxu0 0.0
        %540 = vmatpush1.msra.mxu0 %v501
        %541 = vmatprep.subr.mxu0 0.0
        %542 = vmatpush1.msra.mxu0 %v500
        %543 = vmatprep.subr.mxu0 0.0
        %544 = vmatpush2.msra.mxu0 0.0
        %545 = vmatprep.subr.mxu0 0.0
        %546 = vmatpush2.msra.mxu0 0.0
        %547 = vmatprep.subr.mxu0 0.0
        %548 = vmatpush2.msra.mxu0 0.0
        %549 = vmatprep.subr.mxu0 0.0
        %550 = vmatpush2.msra.mxu0 0.0
        %551 = vmatprep.subr.mxu0 0.0
        %552 = vmatpush2.msra.mxu0 0.0
        %553 = vmatprep.subr.mxu0 0.0
        %554 = vmatpush2.msra.mxu0 0.0
        %555 = vmatprep.subr.mxu0 0.0
        %556 = vmatpush2.msra.mxu0 0.0
        %557 = vmatprep.subr.mxu0 0.0
        %558 = vmatpush2.msra.mxu0 0.0
        %559 = vmatprep.subr.mxu0 0.0
        %560 = vmatpush2.msra.mxu0 0.0
        %561 = vmatprep.subr.mxu0 0.0
        %562 = vmatpush2.msra.mxu0 0.0
        %563 = vmatprep.subr.mxu0 0.0
        %564 = vmatpush2.msra.mxu0 0.0
        %565 = vmatprep.subr.mxu0 0.0
        %566 = vmatpush2.msra.mxu0 0.0
        %567 = vmatprep.subr.mxu0 0.0
        %568 = vmatpush2.msra.mxu0 0.0
        %569 = vmatprep.subr.mxu0 0.0
        %570 = vmatpush2.msra.mxu0 0.0
        %571 = vmatprep.subr.mxu0 0.0
        %572 = vmatpush2.msra.mxu0 0.0
        %573 = vmatprep.subr.mxu0 0.0
        %574 = vmatpush2.msra.mxu0 0.0
        %575 = vmatprep.mubr.f32.mxu0 0.0
        %576 = vmatmul.mubr.f32.gmra.mxu0 %v427
        %v577 = vpop.f32.mrf.mxu0
        %v578 = vadd.f32 %v509, %v577
        %v579 = vpop.f32.mrf.mxu0
        %580 = vdwg.mxu0
        %581 = vst.msk [vmem:[%s408] sm:$0xff] %vm425, %v578
        %v582 = vld [vmem:[#allocation7] sm:$0xff]
        %v583 = vld [vmem:[#allocation7 + $0x8] sm:$0xff]
        %v584 = vld [vmem:[#allocation7 + $0x10] sm:$0xff]
        %v585 = vld [vmem:[#allocation7 + $0x18] sm:$0xff]
        %v586 = vld [vmem:[%s6] sm:$0x1]
        %v588 = vlaneseq
        %v589 = vshrl.u32 %v588, 7
        %v590 = vsub.s32 0, %v589
        %v591 = vrot.slane %v586, %v590
        %593 = vmatprep.subr.mxu0 0.0
        %594 = vmatpush1.msra.mxu0 0.0
        %595 = vmatprep.subr.mxu0 0.0
        %596 = vmatpush1.msra.mxu0 0.0
        %597 = vmatprep.subr.mxu0 0.0
        %598 = vmatpush1.msra.mxu0 0.0
        %599 = vmatprep.subr.mxu0 0.0
        %600 = vmatpush1.msra.mxu0 0.0
        %601 = vmatprep.subr.mxu0 0.0
        %602 = vmatpush1.msra.mxu0 0.0
        %603 = vmatprep.subr.mxu0 0.0
        %604 = vmatpush1.msra.mxu0 0.0
        %605 = vmatprep.subr.mxu0 0.0
        %606 = vmatpush1.msra.mxu0 0.0
        %607 = vmatprep.subr.mxu0 0.0
        %608 = vmatpush1.msra.mxu0 0.0
        %609 = vmatprep.subr.mxu0 0.0
        %610 = vmatpush1.msra.mxu0 0.0
        %611 = vmatprep.subr.mxu0 0.0
        %612 = vmatpush1.msra.mxu0 0.0
        %613 = vmatprep.subr.mxu0 0.0
        %614 = vmatpush1.msra.mxu0 0.0
        %615 = vmatprep.subr.mxu0 0.0
        %616 = vmatpush1.msra.mxu0 0.0
        %617 = vmatprep.subr.mxu0 0.0
        %618 = vmatpush1.msra.mxu0 %v585
        %619 = vmatprep.subr.mxu0 0.0
        %620 = vmatpush1.msra.mxu0 %v584
        %621 = vmatprep.subr.mxu0 0.0
        %622 = vmatpush1.msra.mxu0 %v583
        %623 = vmatprep.subr.mxu0 0.0
        %624 = vmatpush1.msra.mxu0 %v582
        %625 = vmatprep.subr.mxu0 0.0
        %626 = vmatpush2.msra.mxu0 0.0
        %627 = vmatprep.subr.mxu0 0.0
        %628 = vmatpush2.msra.mxu0 0.0
        %629 = vmatprep.subr.mxu0 0.0
        %630 = vmatpush2.msra.mxu0 0.0
        %631 = vmatprep.subr.mxu0 0.0
        %632 = vmatpush2.msra.mxu0 0.0
        %633 = vmatprep.subr.mxu0 0.0
        %634 = vmatpush2.msra.mxu0 0.0
        %635 = vmatprep.subr.mxu0 0.0
        %636 = vmatpush2.msra.mxu0 0.0
        %637 = vmatprep.subr.mxu0 0.0
        %638 = vmatpush2.msra.mxu0 0.0
        %639 = vmatprep.subr.mxu0 0.0
        %640 = vmatpush2.msra.mxu0 0.0
        %641 = vmatprep.subr.mxu0 0.0
        %642 = vmatpush2.msra.mxu0 0.0
        %643 = vmatprep.subr.mxu0 0.0
        %644 = vmatpush2.msra.mxu0 0.0
        %645 = vmatprep.subr.mxu0 0.0
        %646 = vmatpush2.msra.mxu0 0.0
        %647 = vmatprep.subr.mxu0 0.0
        %648 = vmatpush2.msra.mxu0 0.0
        %649 = vmatprep.subr.mxu0 0.0
        %650 = vmatpush2.msra.mxu0 0.0
        %651 = vmatprep.subr.mxu0 0.0
        %652 = vmatpush2.msra.mxu0 0.0
        %653 = vmatprep.subr.mxu0 0.0
        %654 = vmatpush2.msra.mxu0 0.0
        %655 = vmatprep.subr.mxu0 0.0
        %656 = vmatpush2.msra.mxu0 0.0
        %657 = vmatprep.mubr.f32.mxu0 0.0
        %658 = vmatmul.mubr.f32.gmra.mxu0 %v427
        %v659 = vpop.f32.mrf.mxu0
        %v660 = vadd.f32 %v591, %v659
        %v661 = vpop.f32.mrf.mxu0
        %662 = vdwg.mxu0
        %663 = vst.msk [vmem:[%s412] sm:$0xff] %vm425, %v660
        %p664 = scmp.lt.s32.totalorder %s26, 1
        %s665 = scalar_select %p664, %s26, 1
        %s666 = smul.addr %s665, 8
        %s667 = scalar_lea.vmem %s7, %s666
        %p668 = scmp.lt.s32.totalorder %s26, 1
        %s669 = scalar_select %p668, %s26, 1
        %s670 = smul.addr %s669, 8
        %s671 = scalar_lea.vmem %s8, %s670
        %p672 = scmp.lt.s32.totalorder %s26, 1
        %s673 = scalar_select %p672, %s26, 1
        %s674 = smul.addr %s673, 8
        %s675 = scalar_lea.vmem %s9, %s674
        // Predicated region
        $region65: #{multi_head_attention.3} parent=47 // pred_check
          %p676 = pneg %p196
        $region66: #{multi_head_attention.3} parent=47 // pred_check_branch
          %678 = sbr.rel (%p676) target = $region68
        $region67: #{multi_head_attention.3} parent=47 // pred_region
          _
        $region68: #{multi_head_attention.3} parent=47 // pred_fallthru
          _
        // Predicated region
        $region69: #{multi_head_attention.3} parent=47 // pred_check
          %p679 = pneg %p222
        $region70: #{multi_head_attention.3} parent=47 // pred_check_branch
          %681 = sbr.rel (%p679) target = $region72
        $region71: #{multi_head_attention.3} parent=47 // pred_region
          _
        $region72: #{multi_head_attention.3} parent=47 // pred_fallthru
          _
        // Predicated region
        $region73: #{multi_head_attention.3} parent=47 // pred_check
          %p682 = pneg %p248
        $region74: #{multi_head_attention.3} parent=47 // pred_check_branch
          %684 = sbr.rel (%p682) target = $region76
        $region75: #{multi_head_attention.3} parent=47 // pred_region
          _
        $region76: #{multi_head_attention.3} parent=47 // pred_fallthru
          _
      $region48: #{multi_head_attention.3} parent=5 // pred_fallthru
        _
      %p685 = scmp.le.s32.totalorder 2, %s21
      // Predicated region
      $region77: #{multi_head_attention.3} parent=5 // pred_check
        %p686 = pneg %p685
      $region78: #{multi_head_attention.3} parent=5 // pred_check_branch
        %688 = sbr.rel (%p686) target = $region80
      $region79: #{multi_head_attention.3} parent=5 // pred_region
        %s689 = ssub.s32 %s21, 2
        // Predicated region
        $region81: #{multi_head_attention.3} parent=79 // pred_check
          %p690 = pneg %p202
        $region82: #{multi_head_attention.3} parent=79 // pred_check_branch
          %692 = sbr.rel (%p690) target = $region84
        $region83: #{multi_head_attention.3} parent=79 // pred_region
          %p693 = scmp.lt.s32.totalorder %s27, 1
          %s694 = scalar_select %p693, %s27, 1
          %s695 = smul.addr %s694, 8
          %s696 = scalar_lea.vmem %s7, %s695
        $region84: #{multi_head_attention.3} parent=79 // pred_fallthru
          _
        // Predicated region
        $region85: #{multi_head_attention.3} parent=79 // pred_check
          %p697 = pneg %p228
        $region86: #{multi_head_attention.3} parent=79 // pred_check_branch
          %699 = sbr.rel (%p697) target = $region88
        $region87: #{multi_head_attention.3} parent=79 // pred_region
          %p700 = scmp.lt.s32.totalorder %s27, 1
          %s701 = scalar_select %p700, %s27, 1
          %s702 = smul.addr %s701, 8
          %s703 = scalar_lea.vmem %s8, %s702
        $region88: #{multi_head_attention.3} parent=79 // pred_fallthru
          _
        // Predicated region
        $region89: #{multi_head_attention.3} parent=79 // pred_check
          %p704 = pneg %p254
        $region90: #{multi_head_attention.3} parent=79 // pred_check_branch
          %706 = sbr.rel (%p704) target = $region92
        $region91: #{multi_head_attention.3} parent=79 // pred_region
          %p707 = scmp.lt.s32.totalorder %s27, 1
          %s708 = scalar_select %p707, %s27, 1
          %s709 = smul.addr %s708, 8
          %s710 = scalar_lea.vmem %s9, %s709
        $region92: #{multi_head_attention.3} parent=79 // pred_fallthru
          _
      $region80: #{multi_head_attention.3} parent=5 // pred_fallthru
        _
    $region6: #{multi_head_attention.3} parent=1 // loop_footer
      %s25 = sadd.s32 1, %s21
    $region7: #{multi_head_attention.3} parent=1 // loop_footer_branch
      %20 = sbr.rel target = $region3
    $region8: #{multi_head_attention.3} parent=1 // loop_exit
      _
    %711 = vsyncpa [#allocation3], 1
    %s712 = scalar_lea.sflag [#allocation3], 1
    %713 = vsyncpa %s712, 1
    %714 = vsyncpa [#allocation5], 1
    %715 = vsyncpa [#allocation8], 1

// kernel: multi_head_attention.5
$region0: #{multi_head_attention.5}
  #allocation0 [shape = 'u32[]', space=smem, size = 0x4, offset = 0x4, fixed_abs, tag = 'smem constant byte address 0x4 - core index']
  #allocation1 [shape = 'u32[144,128]{1,0:T(1,128)}', space=vmem, size = 0x12000, scoped, tag = 'internal scratch']
  %s0 = inlined_call_operand.vmem [shape: f32[16,32], index: 0, kind: input, shape index: {}]
  %s1 = inlined_call_operand.vmem [shape: f32[16,32], index: 1, kind: input, shape index: {}]
  %s2 = inlined_call_operand.vmem [shape: f32[32,32], index: 2, kind: input, shape index: {}]
  %s3 = inlined_call_operand.vmem [shape: f32[1,32], index: 3, kind: input, shape index: {}]
  %s4 = inlined_call_operand.vmem [shape: f32[1,32], index: 4, kind: input, shape index: {}]
  %s5 = inlined_call_operand.vmem [shape: f32[1,32], index: 5, kind: input, shape index: {}]
  %s6 = inlined_call_operand.hbm [shape: f32[16,32], index: 6, kind: output, shape index: {}]
  %s7 = sld [smem:[#allocation0]]
  $region57: #{multi_head_attention.5} parent=0
    _
  %s9 = ssub.s32 1, %s7
  %s10 = scalar_select 0, %s9, %s7
  $region1: #{multi_head_attention.5} parent=0
    #allocation2 [shape = 'u8[8192]{0}', space=vmem, size = 0x2000, scoped, tag = 'output window, operand 0']
    #allocation3 [shape = 's32[2]{0}', space=sflag, size = 0x8, scoped, tag = 'scoped memory for multi_head_attention.5']
    %11 = vsyncpa [#allocation3], 0
    %s12 = scalar_lea.sflag [#allocation3], 1
    %13 = vsyncpa %s12, 0
    loop: start=0, step=1, limit=4
    $region2: #{multi_head_attention.5} parent=1 // loop_pre_header
      _
    $region3: #{multi_head_attention.5} parent=1 // loop_header
      %s15 = sphi 0, %s19
      %p16 = scmp.ge.s32.totalorder %s15, 4
      %s25 = sphi 0, %s27
      %s28 = sphi 0, %s25
      %s29 = sphi 0, %s28
      %s45 = sphi 0, %s29
      %s51 = sphi 0, %s53
      %s54 = sphi 0, %s51
      %s55 = sphi 0, %s54
      %s71 = sphi 0, %s55
      %s75 = sphi 0, %s75
      %s77 = sphi 0, %s75
      %s78 = sphi 0, %s77
      %s92 = sphi 0, %s78
      %s96 = sphi 0, %s96
      %s98 = sphi 0, %s96
      %s99 = sphi 0, %s98
      %s113 = sphi 0, %s99
      %s117 = sphi 0, %s117
      %s119 = sphi 0, %s117
      %s120 = sphi 0, %s119
      %s134 = sphi 0, %s120
      %s138 = sphi 0, %s138
      %s140 = sphi 0, %s138
      %s141 = sphi 0, %s140
      %s155 = sphi 0, %s141
      %s161 = sphi 0, %s163
      %s164 = sphi 0, %s161
      %s165 = sphi 0, %s164
      %s181 = sphi 0, %s165
    $region4: #{multi_head_attention.5} parent=1 // loop_header_branch
      %18 = sbr.rel (%p16) target = $region8
    $region5: #{multi_head_attention.5} parent=1 // loop_body
      %s20 = ssub.s32 %s15, 1
      %s21 = ssub.s32 %s15, 2
      %s22 = sadd.s32 %s15, 1
      %s23 = ssub.s32 %s15, %s22
      %p24 = scmp.eq.s32.totalorder %s23, 0
      %s26 = sadd.s32 %s25, 1
      %s27 = scalar_select %p24, %s25, %s26
      %p30 = pneg %p24
      %p31 = scmp.eq.s32.totalorder %s15, 1
      %p32 = por %p30, %p31
      %p33 = scmp.ne.s32.totalorder %s25, %s28
      %p34 = scmp.eq.s32.totalorder %s15, 0
      %p35 = por %p33, %p34
      %p36 = scmp.ne.s32.totalorder %s25, %s28
      %p37 = scmp.eq.s32.totalorder %s20, 1
      %p38 = por %p36, %p37
      %p39 = scmp.ne.s32.totalorder %s28, %s29
      %p40 = scmp.eq.s32.totalorder %s20, 0
      %p41 = por %p39, %p40
      %p42 = scmp.ne.s32.totalorder %s28, %s29
      %p43 = scmp.eq.s32.totalorder %s21, 1
      %p44 = por %p42, %p43
      %p46 = scmp.ne.s32.totalorder %s29, %s45
      %p47 = scmp.eq.s32.totalorder %s21, 0
      %p48 = por %p46, %p47
      %s49 = ssub.s32 %s15, %s22
      %p50 = scmp.eq.s32.totalorder %s49, 0
      %s52 = sadd.s32 %s51, 1
      %s53 = scalar_select %p50, %s51, %s52
      %p56 = pneg %p50
      %p57 = scmp.eq.s32.totalorder %s15, 1
      %p58 = por %p56, %p57
      %p59 = scmp.ne.s32.totalorder %s51, %s54
      %p60 = scmp.eq.s32.totalorder %s15, 0
      %p61 = por %p59, %p60
      %p62 = scmp.ne.s32.totalorder %s51, %s54
      %p63 = scmp.eq.s32.totalorder %s20, 1
      %p64 = por %p62, %p63
      %p65 = scmp.ne.s32.totalorder %s54, %s55
      %p66 = scmp.eq.s32.totalorder %s20, 0
      %p67 = por %p65, %p66
      %p68 = scmp.ne.s32.totalorder %s54, %s55
      %p69 = scmp.eq.s32.totalorder %s21, 1
      %p70 = por %p68, %p69
      %p72 = scmp.ne.s32.totalorder %s55, %s71
      %p73 = scmp.eq.s32.totalorder %s21, 0
      %p74 = por %p72, %p73
      %s76 = sadd.s32 %s75, 1
      %p79 = scmp.eq.s32.totalorder %s15, 1
      %p80 = scmp.ne.s32.totalorder %s75, %s77
      %p81 = scmp.eq.s32.totalorder %s15, 0
      %p82 = por %p80, %p81
      %p83 = scmp.ne.s32.totalorder %s75, %s77
      %p84 = scmp.eq.s32.totalorder %s20, 1
      %p85 = por %p83, %p84
      %p86 = scmp.ne.s32.totalorder %s77, %s78
      %p87 = scmp.eq.s32.totalorder %s20, 0
      %p88 = por %p86, %p87
      %p89 = scmp.ne.s32.totalorder %s77, %s78
      %p90 = scmp.eq.s32.totalorder %s21, 1
      %p91 = por %p89, %p90
      %p93 = scmp.ne.s32.totalorder %s78, %s92
      %p94 = scmp.eq.s32.totalorder %s21, 0
      %p95 = por %p93, %p94
      %s97 = sadd.s32 %s96, 1
      %p100 = scmp.eq.s32.totalorder %s15, 1
      %p101 = scmp.ne.s32.totalorder %s96, %s98
      %p102 = scmp.eq.s32.totalorder %s15, 0
      %p103 = por %p101, %p102
      %p104 = scmp.ne.s32.totalorder %s96, %s98
      %p105 = scmp.eq.s32.totalorder %s20, 1
      %p106 = por %p104, %p105
      %p107 = scmp.ne.s32.totalorder %s98, %s99
      %p108 = scmp.eq.s32.totalorder %s20, 0
      %p109 = por %p107, %p108
      %p110 = scmp.ne.s32.totalorder %s98, %s99
      %p111 = scmp.eq.s32.totalorder %s21, 1
      %p112 = por %p110, %p111
      %p114 = scmp.ne.s32.totalorder %s99, %s113
      %p115 = scmp.eq.s32.totalorder %s21, 0
      %p116 = por %p114, %p115
      %s118 = sadd.s32 %s117, 1
      %p121 = scmp.eq.s32.totalorder %s15, 1
      %p122 = scmp.ne.s32.totalorder %s117, %s119
      %p123 = scmp.eq.s32.totalorder %s15, 0
      %p124 = por %p122, %p123
      %p125 = scmp.ne.s32.totalorder %s117, %s119
      %p126 = scmp.eq.s32.totalorder %s20, 1
      %p127 = por %p125, %p126
      %p128 = scmp.ne.s32.totalorder %s119, %s120
      %p129 = scmp.eq.s32.totalorder %s20, 0
      %p130 = por %p128, %p129
      %p131 = scmp.ne.s32.totalorder %s119, %s120
      %p132 = scmp.eq.s32.totalorder %s21, 1
      %p133 = por %p131, %p132
      %p135 = scmp.ne.s32.totalorder %s120, %s134
      %p136 = scmp.eq.s32.totalorder %s21, 0
      %p137 = por %p135, %p136
      %s139 = sadd.s32 %s138, 1
      %p142 = scmp.eq.s32.totalorder %s15, 1
      %p143 = scmp.ne.s32.totalorder %s138, %s140
      %p144 = scmp.eq.s32.totalorder %s15, 0
      %p145 = por %p143, %p144
      %p146 = scmp.ne.s32.totalorder %s138, %s140
      %p147 = scmp.eq.s32.totalorder %s20, 1
      %p148 = por %p146, %p147
      %p149 = scmp.ne.s32.totalorder %s140, %s141
      %p150 = scmp.eq.s32.totalorder %s20, 0
      %p151 = por %p149, %p150
      %p152 = scmp.ne.s32.totalorder %s140, %s141
      %p153 = scmp.eq.s32.totalorder %s21, 1
      %p154 = por %p152, %p153
      %p156 = scmp.ne.s32.totalorder %s141, %s155
      %p157 = scmp.eq.s32.totalorder %s21, 0
      %p158 = por %p156, %p157
      %s159 = ssub.s32 %s15, %s22
      %p160 = scmp.eq.s32.totalorder %s159, 0
      %s162 = sadd.s32 %s161, 1
      %s163 = scalar_select %p160, %s161, %s162
      %p166 = pneg %p160
      %p167 = scmp.eq.s32.totalorder %s15, 1
      %p168 = por %p166, %p167
      %p169 = scmp.ne.s32.totalorder %s161, %s164
      %p170 = scmp.eq.s32.totalorder %s15, 0
      %p171 = por %p169, %p170
      %p172 = scmp.ne.s32.totalorder %s161, %s164
      %p173 = scmp.eq.s32.totalorder %s20, 1
      %p174 = por %p172, %p173
      %p175 = scmp.ne.s32.totalorder %s164, %s165
      %p176 = scmp.eq.s32.totalorder %s20, 0
      %p177 = por %p175, %p176
      %p178 = scmp.ne.s32.totalorder %s164, %s165
      %p179 = scmp.eq.s32.totalorder %s21, 1
      %p180 = por %p178, %p179
      %p182 = scmp.ne.s32.totalorder %s165, %s181
      %p183 = scmp.eq.s32.totalorder %s21, 0
      %p184 = por %p182, %p183
      %p185 = scmp.le.s32.totalorder 1, %s15
      %p186 = scmp.lt.s32.totalorder %s15, 3
      %p187 = pnand %p185, %p186
      %p188 = pneg %p187
      // Predicated region
      $region9: #{multi_head_attention.5} parent=5 // pred_check
        _
      $region10: #{multi_head_attention.5} parent=5 // pred_check_branch
        %190 = sbr.rel (%p187) target = $region12
      $region11: #{multi_head_attention.5} parent=5 // pred_region
        %s191 = ssub.s32 %s15, 1
        // Predicated region
        $region13: #{multi_head_attention.5} parent=11 // pred_check
          %p192 = pneg %p88
        $region14: #{multi_head_attention.5} parent=11 // pred_check_branch
          %194 = sbr.rel (%p192) target = $region16
        $region15: #{multi_head_attention.5} parent=11 // pred_region
          _
        $region16: #{multi_head_attention.5} parent=11 // pred_fallthru
          _
        // Predicated region
        $region17: #{multi_head_attention.5} parent=11 // pred_check
          %p195 = pneg %p109
        $region18: #{multi_head_attention.5} parent=11 // pred_check_branch
          %197 = sbr.rel (%p195) target = $region20
        $region19: #{multi_head_attention.5} parent=11 // pred_region
          _
        $region20: #{multi_head_attention.5} parent=11 // pred_fallthru
          _
        // Predicated region
        $region21: #{multi_head_attention.5} parent=11 // pred_check
          %p198 = pneg %p130
        $region22: #{multi_head_attention.5} parent=11 // pred_check_branch
          %200 = sbr.rel (%p198) target = $region24
        $region23: #{multi_head_attention.5} parent=11 // pred_region
          _
        $region24: #{multi_head_attention.5} parent=11 // pred_fallthru
          _
        // Predicated region
        $region25: #{multi_head_attention.5} parent=11 // pred_check
          %p201 = pneg %p151
        $region26: #{multi_head_attention.5} parent=11 // pred_check_branch
          %203 = sbr.rel (%p201) target = $region28
        $region27: #{multi_head_attention.5} parent=11 // pred_region
          _
        $region28: #{multi_head_attention.5} parent=11 // pred_fallthru
          _
      $region12: #{multi_head_attention.5} parent=5 // pred_fallthru
        _
      %p204 = scmp.lt.s32.totalorder %s15, 2
      // Predicated region
      $region29: #{multi_head_attention.5} parent=5 // pred_check
        %p205 = pneg %p204
      $region30: #{multi_head_attention.5} parent=5 // pred_check_branch
        %207 = sbr.rel (%p205) target = $region32
      $region31: #{multi_head_attention.5} parent=5 // pred_region
        // Predicated region
        $region33: #{multi_head_attention.5} parent=31 // pred_check
          %p208 = pneg %p35
        $region34: #{multi_head_attention.5} parent=31 // pred_check_branch
          %210 = sbr.rel (%p208) target = $region36
        $region35: #{multi_head_attention.5} parent=31 // pred_region
          %p211 = scmp.lt.s32.totalorder %s15, 1
          %s212 = scalar_select %p211, %s15, 1
          %s213 = smul.addr %s212, 8
          %s214 = scalar_lea.vmem %s0, %s213
        $region36: #{multi_head_attention.5} parent=31 // pred_fallthru
          _
        // Predicated region
        $region37: #{multi_head_attention.5} parent=31 // pred_check
          %p215 = pneg %p61
        $region38: #{multi_head_attention.5} parent=31 // pred_check_branch
          %217 = sbr.rel (%p215) target = $region40
        $region39: #{multi_head_attention.5} parent=31 // pred_region
          %p218 = scmp.lt.s32.totalorder %s15, 1
          %s219 = scalar_select %p218, %s15, 1
          %s220 = smul.addr %s219, 8
          %s221 = scalar_lea.vmem %s1, %s220
        $region40: #{multi_head_attention.5} parent=31 // pred_fallthru
          _
      $region32: #{multi_head_attention.5} parent=5 // pred_fallthru
        _
      %p222 = scmp.le.s32.totalorder 1, %s15
      %p223 = scmp.lt.s32.totalorder %s15, 3
      %p224 = pnand %p222, %p223
      %p225 = pneg %p224
      // Predicated region
      $region41: #{multi_head_attention.5} parent=5 // pred_check
        _
      $region42: #{multi_head_attention.5} parent=5 // pred_check_branch
        %227 = sbr.rel (%p224) target = $region44
      $region43: #{multi_head_attention.5} parent=5 // pred_region
        %s228 = ssub.s32 %s15, 1
        %p229 = scmp.lt.s32.totalorder %s20, 1
        %s230 = scalar_select %p229, %s20, 1
        %s231 = smul.addr %s230, 8
        %s232 = scalar_lea.vmem %s0, %s231
        %p233 = pneg %p41
        %p234 = pneg %p38
        %p235 = scmp.lt.s32.totalorder %s20, 1
        %s236 = scalar_select %p235, %s20, 1
        %s237 = smul.addr %s236, 8
        %s238 = scalar_lea.vmem %s1, %s237
        %p239 = pneg %p67
        %p240 = pneg %p64
        %p241 = pneg %p88
        %p242 = pneg %p85
        %p243 = pneg %p109
        %p244 = pneg %p106
        %p245 = pneg %p130
        %p246 = pneg %p127
        %p247 = pneg %p151
        %p248 = pneg %p148
        %p249 = pneg %p177
        %p250 = pneg %p174
        %s251 = sand.u32 %s164, 1
        %s252 = scalar_lea.sflag [#allocation3], %s251
        %s253 = sand.u32 %s164, 1
        %s254 = smul.addr %s253, 8
        %s255 = scalar_lea.vmem [#allocation2], %s254
        %p256 = scmp.lt.s32.totalorder %s20, 1
        %s257 = scalar_select %p256, %s20, 1
        %s258 = smul.addr %s257, 8
        %s259 = scalar_lea.vmem %s0, %s258
        %p260 = scmp.lt.s32.totalorder %s20, 1
        %s261 = scalar_select %p260, %s20, 1
        %s262 = smul.addr %s261, 8
        %s263 = scalar_lea.vmem %s1, %s262
        %v264 = vld [vmem:[%s259] sm:$0xff]
        %v265 = vld [vmem:[%s2] sm:$0xff]
        %v266 = vld [vmem:[%s2 + $0x8] sm:$0xff]
        %v267 = vld [vmem:[%s2 + $0x10] sm:$0xff]
        %v268 = vld [vmem:[%s2 + $0x18] sm:$0xff]
        %v269 = vld [vmem:[%s3] sm:$0x1]
        %v271 = vlaneseq
        %v272 = vshrl.u32 %v271, 7
        %v273 = vsub.s32 0, %v272
        %v274 = vrot.slane %v269, %v273
        %vm276 = vcmask 261120
        %v278 = vsel %vm276, %v264, 0
        %280 = vmatprep.subr.mxu0 0.0
        %281 = vmatpush1.msra.mxu0 0.0
        %282 = vmatprep.subr.mxu0 0.0
        %283 = vmatpush1.msra.mxu0 0.0
        %284 = vmatprep.subr.mxu0 0.0
        %285 = vmatpush1.msra.mxu0 0.0
        %286 = vmatprep.subr.mxu0 0.0
        %287 = vmatpush1.msra.mxu0 0.0
        %288 = vmatprep.subr.mxu0 0.0
        %289 = vmatpush1.msra.mxu0 0.0
        %290 = vmatprep.subr.mxu0 0.0
        %291 = vmatpush1.msra.mxu0 0.0
        %292 = vmatprep.subr.mxu0 0.0
        %293 = vmatpush1.msra.mxu0 0.0
        %294 = vmatprep.subr.mxu0 0.0
        %295 = vmatpush1.msra.mxu0 0.0
        %296 = vmatprep.subr.mxu0 0.0
        %297 = vmatpush1.msra.mxu0 0.0
        %298 = vmatprep.subr.mxu0 0.0
        %299 = vmatpush1.msra.mxu0 0.0
        %300 = vmatprep.subr.mxu0 0.0
        %301 = vmatpush1.msra.mxu0 0.0
        %302 = vmatprep.subr.mxu0 0.0
        %303 = vmatpush1.msra.mxu0 0.0
        %304 = vmatprep.subr.mxu0 0.0
        %305 = vmatpush1.msra.mxu0 %v268
        %306 = vmatprep.subr.mxu0 0.0
        %307 = vmatpush1.msra.mxu0 %v267
        %308 = vmatprep.subr.mxu0 0.0
        %309 = vmatpush1.msra.mxu0 %v266
        %310 = vmatprep.subr.mxu0 0.0
        %311 = vmatpush1.msra.mxu0 %v265
        %312 = vmatprep.subr.mxu0 0.0
        %313 = vmatpush2.msra.mxu0 0.0
        %314 = vmatprep.subr.mxu0 0.0
        %315 = vmatpush2.msra.mxu0 0.0
        %316 = vmatprep.subr.mxu0 0.0
        %317 = vmatpush2.msra.mxu0 0.0
        %318 = vmatprep.subr.mxu0 0.0
        %319 = vmatpush2.msra.mxu0 0.0
        %320 = vmatprep.subr.mxu0 0.0
        %321 = vmatpush2.msra.mxu0 0.0
        %322 = vmatprep.subr.mxu0 0.0
        %323 = vmatpush2.msra.mxu0 0.0
        %324 = vmatprep.subr.mxu0 0.0
        %325 = vmatpush2.msra.mxu0 0.0
        %326 = vmatprep.subr.mxu0 0.0
        %327 = vmatpush2.msra.mxu0 0.0
        %328 = vmatprep.subr.mxu0 0.0
        %329 = vmatpush2.msra.mxu0 0.0
        %330 = vmatprep.subr.mxu0 0.0
        %331 = vmatpush2.msra.mxu0 0.0
        %332 = vmatprep.subr.mxu0 0.0
        %333 = vmatpush2.msra.mxu0 0.0
        %334 = vmatprep.subr.mxu0 0.0
        %335 = vmatpush2.msra.mxu0 0.0
        %336 = vmatprep.subr.mxu0 0.0
        %337 = vmatpush2.msra.mxu0 0.0
        %338 = vmatprep.subr.mxu0 0.0
        %339 = vmatpush2.msra.mxu0 0.0
        %340 = vmatprep.subr.mxu0 0.0
        %341 = vmatpush2.msra.mxu0 0.0
        %342 = vmatprep.subr.mxu0 0.0
        %343 = vmatpush2.msra.mxu0 0.0
        %344 = vmatprep.mubr.f32.mxu0 0.0
        %345 = vmatmul.mubr.f32.gmra.mxu0 %v278
        %v346 = vpop.f32.mrf.mxu0
        %v347 = vadd.f32 %v274, %v346
        %v348 = vpop.f32.mrf.mxu0
        %349 = vdwg.mxu0
        %v350 = vld [vmem:[%s263] sm:$0xff]
        %v351 = vadd.f32 %v347, %v350
        %v352 = vsel %vm276, %v351, 0.0
        %353 = vadd.xlane.f32.xlu0 %v352
        %v354 = vpop.xlane.xlu0 %353
        %v355 = vrcp.pop 32.0
        %v356 = vmul.f32 %v354, %v355
        %v357 = vsub.f32 %v351, %v356
        %v358 = vmul.f32 %v357, %v357
        %v359 = vsel %vm276, %v358, 0.0
        %360 = vadd.xlane.f32.xlu0 %v359
        %v361 = vpop.xlane.xlu0 %360
        %v362 = vmul.f32 %v361, %v355
        %v363 = vadd.f32 %v362, 1e-05
        %v364 = vrsqrt.pop %v363
        %v365 = vmul.f32 %v357, %v364
        %v366 = vld [vmem:[%s4] sm:$0x1]
        %v368 = vlaneseq
        %v369 = vshrl.u32 %v368, 7
        %v370 = vsub.s32 0, %v369
        %v371 = vrot.slane %v366, %v370
        %v373 = vmul.f32 %v365, %v371
        %v374 = vld [vmem:[%s5] sm:$0x1]
        %v376 = vlaneseq
        %v377 = vshrl.u32 %v376, 7
        %v378 = vsub.s32 0, %v377
        %v379 = vrot.slane %v374, %v378
        %v381 = vadd.f32 %v373, %v379
        %382 = vst.msk [vmem:[%s255] sm:$0xff] %vm276, %v381
        %s383 = sand.u32 %s164, 1
        %s384 = scalar_lea.sflag [#allocation3], %s383
        %s385 = sand.u32 %s164, 1
        %s386 = smul.addr %s385, 8
        %s387 = scalar_lea.vmem [#allocation2], %s386
        // Predicated region
        $region45: #{multi_head_attention.5} parent=43 // pred_check
          %p388 = pneg %p174
        $region46: #{multi_head_attention.5} parent=43 // pred_check_branch
          %390 = sbr.rel (%p388) target = $region48
        $region47: #{multi_head_attention.5} parent=43 // pred_region
          %s392 = ssub.s32 128, 128
          %393 = vsyncadd %s384, %s392
          %s394 = smul.addr %s20, 128
          %s395 = scalar_lea.hbm %s6, %s394
          %s397 = sshll.u32 %s387, 4
          %s398 = int_to_ptr.vmem [resolvable:$true] %s397
          %400 = dma.vmem_to_hbm [thread:$0]  %s398, 128, %s395, %s384
        $region48: #{multi_head_attention.5} parent=43 // pred_fallthru
          _
      $region44: #{multi_head_attention.5} parent=5 // pred_fallthru
        _
      %p401 = scmp.le.s32.totalorder 2, %s15
      // Predicated region
      $region49: #{multi_head_attention.5} parent=5 // pred_check
        %p402 = pneg %p401
      $region50: #{multi_head_attention.5} parent=5 // pred_check_branch
        %404 = sbr.rel (%p402) target = $region52
      $region51: #{multi_head_attention.5} parent=5 // pred_region
        %s405 = ssub.s32 %s15, 2
        // Predicated region
        $region53: #{multi_head_attention.5} parent=51 // pred_check
          %p406 = pneg %p180
        $region54: #{multi_head_attention.5} parent=51 // pred_check_branch
          %408 = sbr.rel (%p406) target = $region56
        $region55: #{multi_head_attention.5} parent=51 // pred_region
          %s409 = sand.u32 %s165, 1
          %s410 = scalar_lea.sflag [#allocation3], %s409
          %s411 = sand.u32 %s165, 1
          %s412 = smul.addr %s411, 8
          %s413 = scalar_lea.vmem [#allocation2], %s412
          %414 = dma.done %s410, 128
        $region56: #{multi_head_attention.5} parent=51 // pred_fallthru
          _
      $region52: #{multi_head_attention.5} parent=5 // pred_fallthru
        _
    $region6: #{multi_head_attention.5} parent=1 // loop_footer
      %s19 = sadd.s32 1, %s15
    $region7: #{multi_head_attention.5} parent=1 // loop_footer_branch
      %14 = sbr.rel target = $region3
    $region8: #{multi_head_attention.5} parent=1 // loop_exit
      _
    %415 = vsyncpa [#allocation3], 1
    %s416 = scalar_lea.sflag [#allocation3], 1
    %417 = vsyncpa %s416, 1

// kernel: multi_head_attention.4
$region0: #{multi_head_attention.4}
  #allocation0 [shape = 'u32[]', space=smem, size = 0x4, offset = 0x4, fixed_abs, tag = 'smem constant byte address 0x4 - core index']
  #allocation1 [shape = 'u32[144,128]{1,0:T(1,128)}', space=vmem, size = 0x12000, scoped, tag = 'internal scratch']
  %s0 = inlined_call_operand.vmem [shape: f32[8,8,8], index: 0, kind: input, shape index: {}]
  %s1 = inlined_call_operand.vmem [shape: f32[8,8,8], index: 1, kind: input, shape index: {}]
  %s2 = inlined_call_operand.vmem [shape: f32[8,8,8], index: 2, kind: input, shape index: {}]
  %s3 = inlined_call_operand.vmem [shape: f32[8,8,8], index: 3, kind: output, shape index: {}]
  %s4 = sld [smem:[#allocation0]]
  $region45: #{multi_head_attention.4} parent=0
    _
  %s6 = ssub.s32 1, %s4
  %s7 = scalar_select 0, %s6, %s4
  loop: start=0, step=1, limit=4
  $region2: #{multi_head_attention.4} parent=0 // loop_pre_header
    _
  $region3: #{multi_head_attention.4} parent=0 // loop_header
    %s9 = sphi 0, %s13
    %p10 = scmp.ge.s32.totalorder %s9, 4
    %s19 = sphi 0, %s21
    %s22 = sphi 0, %s19
    %s23 = sphi 0, %s22
    %s39 = sphi 0, %s23
    %s45 = sphi 0, %s47
    %s48 = sphi 0, %s45
    %s49 = sphi 0, %s48
    %s65 = sphi 0, %s49
    %s71 = sphi 0, %s73
    %s74 = sphi 0, %s71
    %s75 = sphi 0, %s74
    %s91 = sphi 0, %s75
    %s97 = sphi 0, %s99
    %s100 = sphi 0, %s97
    %s101 = sphi 0, %s100
    %s117 = sphi 0, %s101
  $region4: #{multi_head_attention.4} parent=0 // loop_header_branch
    %12 = sbr.rel (%p10) target = $region8
  $region5: #{multi_head_attention.4} parent=0 // loop_body
    %s14 = ssub.s32 %s9, 1
    %s15 = ssub.s32 %s9, 2
    %s16 = sadd.s32 %s9, 1
    %s17 = ssub.s32 %s9, %s16
    %p18 = scmp.eq.s32.totalorder %s17, 0
    %s20 = sadd.s32 %s19, 1
    %s21 = scalar_select %p18, %s19, %s20
    %p24 = pneg %p18
    %p25 = scmp.eq.s32.totalorder %s9, 1
    %p26 = por %p24, %p25
    %p27 = scmp.ne.s32.totalorder %s19, %s22
    %p28 = scmp.eq.s32.totalorder %s9, 0
    %p29 = por %p27, %p28
    %p30 = scmp.ne.s32.totalorder %s19, %s22
    %p31 = scmp.eq.s32.totalorder %s14, 1
    %p32 = por %p30, %p31
    %p33 = scmp.ne.s32.totalorder %s22, %s23
    %p34 = scmp.eq.s32.totalorder %s14, 0
    %p35 = por %p33, %p34
    %p36 = scmp.ne.s32.totalorder %s22, %s23
    %p37 = scmp.eq.s32.totalorder %s15, 1
    %p38 = por %p36, %p37
    %p40 = scmp.ne.s32.totalorder %s23, %s39
    %p41 = scmp.eq.s32.totalorder %s15, 0
    %p42 = por %p40, %p41
    %s43 = ssub.s32 %s9, %s16
    %p44 = scmp.eq.s32.totalorder %s43, 0
    %s46 = sadd.s32 %s45, 1
    %s47 = scalar_select %p44, %s45, %s46
    %p50 = pneg %p44
    %p51 = scmp.eq.s32.totalorder %s9, 1
    %p52 = por %p50, %p51
    %p53 = scmp.ne.s32.totalorder %s45, %s48
    %p54 = scmp.eq.s32.totalorder %s9, 0
    %p55 = por %p53, %p54
    %p56 = scmp.ne.s32.totalorder %s45, %s48
    %p57 = scmp.eq.s32.totalorder %s14, 1
    %p58 = por %p56, %p57
    %p59 = scmp.ne.s32.totalorder %s48, %s49
    %p60 = scmp.eq.s32.totalorder %s14, 0
    %p61 = por %p59, %p60
    %p62 = scmp.ne.s32.totalorder %s48, %s49
    %p63 = scmp.eq.s32.totalorder %s15, 1
    %p64 = por %p62, %p63
    %p66 = scmp.ne.s32.totalorder %s49, %s65
    %p67 = scmp.eq.s32.totalorder %s15, 0
    %p68 = por %p66, %p67
    %s69 = ssub.s32 %s9, %s16
    %p70 = scmp.eq.s32.totalorder %s69, 0
    %s72 = sadd.s32 %s71, 1
    %s73 = scalar_select %p70, %s71, %s72
    %p76 = pneg %p70
    %p77 = scmp.eq.s32.totalorder %s9, 1
    %p78 = por %p76, %p77
    %p79 = scmp.ne.s32.totalorder %s71, %s74
    %p80 = scmp.eq.s32.totalorder %s9, 0
    %p81 = por %p79, %p80
    %p82 = scmp.ne.s32.totalorder %s71, %s74
    %p83 = scmp.eq.s32.totalorder %s14, 1
    %p84 = por %p82, %p83
    %p85 = scmp.ne.s32.totalorder %s74, %s75
    %p86 = scmp.eq.s32.totalorder %s14, 0
    %p87 = por %p85, %p86
    %p88 = scmp.ne.s32.totalorder %s74, %s75
    %p89 = scmp.eq.s32.totalorder %s15, 1
    %p90 = por %p88, %p89
    %p92 = scmp.ne.s32.totalorder %s75, %s91
    %p93 = scmp.eq.s32.totalorder %s15, 0
    %p94 = por %p92, %p93
    %s95 = ssub.s32 %s9, %s16
    %p96 = scmp.eq.s32.totalorder %s95, 0
    %s98 = sadd.s32 %s97, 1
    %s99 = scalar_select %p96, %s97, %s98
    %p102 = pneg %p96
    %p103 = scmp.eq.s32.totalorder %s9, 1
    %p104 = por %p102, %p103
    %p105 = scmp.ne.s32.totalorder %s97, %s100
    %p106 = scmp.eq.s32.totalorder %s9, 0
    %p107 = por %p105, %p106
    %p108 = scmp.ne.s32.totalorder %s97, %s100
    %p109 = scmp.eq.s32.totalorder %s14, 1
    %p110 = por %p108, %p109
    %p111 = scmp.ne.s32.totalorder %s100, %s101
    %p112 = scmp.eq.s32.totalorder %s14, 0
    %p113 = por %p111, %p112
    %p114 = scmp.ne.s32.totalorder %s100, %s101
    %p115 = scmp.eq.s32.totalorder %s15, 1
    %p116 = por %p114, %p115
    %p118 = scmp.ne.s32.totalorder %s101, %s117
    %p119 = scmp.eq.s32.totalorder %s15, 0
    %p120 = por %p118, %p119
    %p121 = scmp.le.s32.totalorder 1, %s9
    %p122 = scmp.lt.s32.totalorder %s9, 3
    %p123 = pnand %p121, %p122
    %p124 = pneg %p123
    // Predicated region
    $region9: #{multi_head_attention.4} parent=5 // pred_check
      _
    $region10: #{multi_head_attention.4} parent=5 // pred_check_branch
      %126 = sbr.rel (%p123) target = $region12
    $region11: #{multi_head_attention.4} parent=5 // pred_region
      %s127 = ssub.s32 %s9, 1
    $region12: #{multi_head_attention.4} parent=5 // pred_fallthru
      _
    %p128 = scmp.lt.s32.totalorder %s9, 2
    // Predicated region
    $region13: #{multi_head_attention.4} parent=5 // pred_check
      %p129 = pneg %p128
    $region14: #{multi_head_attention.4} parent=5 // pred_check_branch
      %131 = sbr.rel (%p129) target = $region16
    $region15: #{multi_head_attention.4} parent=5 // pred_region
      // Predicated region
      $region17: #{multi_head_attention.4} parent=15 // pred_check
        %p132 = pneg %p29
      $region18: #{multi_head_attention.4} parent=15 // pred_check_branch
        %134 = sbr.rel (%p132) target = $region20
      $region19: #{multi_head_attention.4} parent=15 // pred_region
        %s135 = smul.u32 4, %s9
        %p136 = scmp.lt.s32.totalorder %s135, 7
        %s137 = scalar_select %p136, %s135, 7
        %s138 = smul.addr %s137, 8
        %s139 = scalar_lea.vmem %s0, %s138
        %s140 = smul.u32 4, %s9
      $region20: #{multi_head_attention.4} parent=15 // pred_fallthru
        _
      // Predicated region
      $region21: #{multi_head_attention.4} parent=15 // pred_check
        %p141 = pneg %p55
      $region22: #{multi_head_attention.4} parent=15 // pred_check_branch
        %143 = sbr.rel (%p141) target = $region24
      $region23: #{multi_head_attention.4} parent=15 // pred_region
        %s144 = smul.u32 4, %s9
        %p145 = scmp.lt.s32.totalorder %s144, 7
        %s146 = scalar_select %p145, %s144, 7
        %s147 = smul.addr %s146, 8
        %s148 = scalar_lea.vmem %s1, %s147
        %s149 = smul.u32 4, %s9
      $region24: #{multi_head_attention.4} parent=15 // pred_fallthru
        _
      // Predicated region
      $region25: #{multi_head_attention.4} parent=15 // pred_check
        %p150 = pneg %p81
      $region26: #{multi_head_attention.4} parent=15 // pred_check_branch
        %152 = sbr.rel (%p150) target = $region28
      $region27: #{multi_head_attention.4} parent=15 // pred_region
        %s153 = smul.u32 4, %s9
        %p154 = scmp.lt.s32.totalorder %s153, 7
        %s155 = scalar_select %p154, %s153, 7
        %s156 = smul.addr %s155, 8
        %s157 = scalar_lea.vmem %s2, %s156
        %s158 = smul.u32 4, %s9
      $region28: #{multi_head_attention.4} parent=15 // pred_fallthru
        _
    $region16: #{multi_head_attention.4} parent=5 // pred_fallthru
      _
    %p159 = scmp.le.s32.totalorder 1, %s9
    %p160 = scmp.lt.s32.totalorder %s9, 3
    %p161 = pnand %p159, %p160
    %p162 = pneg %p161
    // Predicated region
    $region29: #{multi_head_attention.4} parent=5 // pred_check
      _
    $region30: #{multi_head_attention.4} parent=5 // pred_check_branch
      %164 = sbr.rel (%p161) target = $region32
    $region31: #{multi_head_attention.4} parent=5 // pred_region
      %s165 = ssub.s32 %s9, 1
      %s166 = smul.u32 4, %s14
      %p167 = scmp.lt.s32.totalorder %s166, 7
      %s168 = scalar_select %p167, %s166, 7
      %s169 = smul.addr %s168, 8
      %s170 = scalar_lea.vmem %s0, %s169
      %p171 = pneg %p35
      %p172 = pneg %p32
      %s173 = smul.u32 4, %s14
      %p174 = scmp.lt.s32.totalorder %s173, 7
      %s175 = scalar_select %p174, %s173, 7
      %s176 = smul.addr %s175, 8
      %s177 = scalar_lea.vmem %s1, %s176
      %p178 = pneg %p61
      %p179 = pneg %p58
      %s180 = smul.u32 4, %s14
      %p181 = scmp.lt.s32.totalorder %s180, 7
      %s182 = scalar_select %p181, %s180, 7
      %s183 = smul.addr %s182, 8
      %s184 = scalar_lea.vmem %s2, %s183
      %p185 = pneg %p87
      %p186 = pneg %p84
      %p187 = pneg %p113
      %p188 = pneg %p110
      %s189 = smul.u32 4, %s14
      %p190 = scmp.lt.s32.totalorder %s189, 7
      %s191 = scalar_select %p190, %s189, 7
      %s192 = smul.addr %s191, 8
      %s193 = scalar_lea.vmem %s3, %s192
      %s194 = smul.u32 4, %s14
      %p195 = scmp.lt.s32.totalorder %s194, 7
      %s196 = scalar_select %p195, %s194, 7
      %s197 = smul.addr %s196, 8
      %s198 = scalar_lea.vmem %s0, %s197
      %s199 = smul.u32 4, %s14
      %s200 = smul.u32 4, %s14
      %p201 = scmp.lt.s32.totalorder %s200, 7
      %s202 = scalar_select %p201, %s200, 7
      %s203 = smul.addr %s202, 8
      %s204 = scalar_lea.vmem %s1, %s203
      %s205 = smul.u32 4, %s14
      %s206 = smul.u32 4, %s14
      %p207 = scmp.lt.s32.totalorder %s206, 7
      %s208 = scalar_select %p207, %s206, 7
      %s209 = smul.addr %s208, 8
      %s210 = scalar_lea.vmem %s2, %s209
      %s211 = smul.u32 4, %s14
      %s212 = smul.u32 4, %s14
      %p213 = scmp.lt.s32.totalorder %s212, 7
      %s214 = scalar_select %p213, %s212, 7
      %s215 = smul.addr %s214, 8
      %s216 = scalar_lea.vmem %s3, %s215
      %s217 = smul.u32 4, %s14
      %v218 = vld [vmem:[%s198] sm:$0xff]
      %v219 = vld [vmem:[%s198 + $0x8] sm:$0xff]
      %v220 = vld [vmem:[%s198 + $0x10] sm:$0xff]
      %v221 = vld [vmem:[%s198 + $0x18] sm:$0xff]
      %v222 = vld [vmem:[%s204] sm:$0xff]
      %v223 = vld [vmem:[%s204 + $0x8] sm:$0xff]
      %v224 = vld [vmem:[%s204 + $0x10] sm:$0xff]
      %v225 = vld [vmem:[%s204 + $0x18] sm:$0xff]
      %v226 = vld [vmem:[%s210] sm:$0xff]
      %v227 = vld [vmem:[%s210 + $0x8] sm:$0xff]
      %v228 = vld [vmem:[%s210 + $0x10] sm:$0xff]
      %v229 = vld [vmem:[%s210 + $0x18] sm:$0xff]
      %vm230 = vcmask 64512
      %v232 = vsel %vm230, %v218, 0
      %v235 = vsel %vm230, %v222, 0
      %237 = vmatprep.subr.mxu0 0.0
      %238 = vmatpush1.xpose.msra.mxu0 0.0
      %239 = vmatprep.subr.mxu0 0.0
      %240 = vmatpush1.xpose.msra.mxu0 0.0
      %241 = vmatprep.subr.mxu0 0.0
      %242 = vmatpush1.xpose.msra.mxu0 0.0
      %243 = vmatprep.subr.mxu0 0.0
      %244 = vmatpush1.xpose.msra.mxu0 0.0
      %245 = vmatprep.subr.mxu0 0.0
      %246 = vmatpush1.xpose.msra.mxu0 0.0
      %247 = vmatprep.subr.mxu0 0.0
      %248 = vmatpush1.xpose.msra.mxu0 0.0
      %249 = vmatprep.subr.mxu0 0.0
      %250 = vmatpush1.xpose.msra.mxu0 0.0
      %251 = vmatprep.subr.mxu0 0.0
      %252 = vmatpush1.xpose.msra.mxu0 0.0
      %253 = vmatprep.subr.mxu0 0.0
      %254 = vmatpush1.xpose.msra.mxu0 0.0
      %255 = vmatprep.subr.mxu0 0.0
      %256 = vmatpush1.xpose.msra.mxu0 0.0
      %257 = vmatprep.subr.mxu0 0.0
      %258 = vmatpush1.xpose.msra.mxu0 0.0
      %259 = vmatprep.subr.mxu0 0.0
      %260 = vmatpush1.xpose.msra.mxu0 0.0
      %261 = vmatprep.subr.mxu0 0.0
      %262 = vmatpush1.xpose.msra.mxu0 0.0
      %263 = vmatprep.subr.mxu0 0.0
      %264 = vmatpush1.xpose.msra.mxu0 0.0
      %265 = vmatprep.subr.mxu0 0.0
      %266 = vmatpush1.xpose.msra.mxu0 0.0
      %267 = vmatprep.subr.mxu0 0.0
      %268 = vmatpush1.xpose.msra.mxu0 %v235
      %269 = vmatprep.subr.mxu0 0.0
      %270 = vmatpush2.xpose.msra.mxu0 0.0
      %271 = vmatprep.subr.mxu0 0.0
      %272 = vmatpush2.xpose.msra.mxu0 0.0
      %273 = vmatprep.subr.mxu0 0.0
      %274 = vmatpush2.xpose.msra.mxu0 0.0
      %275 = vmatprep.subr.mxu0 0.0
      %276 = vmatpush2.xpose.msra.mxu0 0.0
      %277 = vmatprep.subr.mxu0 0.0
      %278 = vmatpush2.xpose.msra.mxu0 0.0
      %279 = vmatprep.subr.mxu0 0.0
      %280 = vmatpush2.xpose.msra.mxu0 0.0
      %281 = vmatprep.subr.mxu0 0.0
      %282 = vmatpush2.xpose.msra.mxu0 0.0
      %283 = vmatprep.subr.mxu0 0.0
      %284 = vmatpush2.xpose.msra.mxu0 0.0
      %285 = vmatprep.subr.mxu0 0.0
      %286 = vmatpush2.xpose.msra.mxu0 0.0
      %287 = vmatprep.subr.mxu0 0.0
      %288 = vmatpush2.xpose.msra.mxu0 0.0
      %289 = vmatprep.subr.mxu0 0.0
      %290 = vmatpush2.xpose.msra.mxu0 0.0
      %291 = vmatprep.subr.mxu0 0.0
      %292 = vmatpush2.xpose.msra.mxu0 0.0
      %293 = vmatprep.subr.mxu0 0.0
      %294 = vmatpush2.xpose.msra.mxu0 0.0
      %295 = vmatprep.subr.mxu0 0.0
      %296 = vmatpush2.xpose.msra.mxu0 0.0
      %297 = vmatprep.subr.mxu0 0.0
      %298 = vmatpush2.xpose.msra.mxu0 0.0
      %299 = vmatprep.subr.mxu0 0.0
      %300 = vmatpush2.xpose.msra.mxu0 0.0
      %301 = vmatprep.mubr.f32.mxu0 0.0
      %302 = vmatmul.mubr.f32.gmra.mxu0 %v232
      %v303 = vpop.f32.mrf.mxu0
      %v304 = vadd.f32 0.0, %v303
      %v305 = vpop.f32.mrf.mxu0
      %306 = vdwg.mxu0
      %v308 = vsel %vm230, %v219, 0
      %v311 = vsel %vm230, %v223, 0
      %313 = vmatprep.subr.mxu0 0.0
      %314 = vmatpush1.xpose.msra.mxu0 0.0
      %315 = vmatprep.subr.mxu0 0.0
      %316 = vmatpush1.xpose.msra.mxu0 0.0
      %317 = vmatprep.subr.mxu0 0.0
      %318 = vmatpush1.xpose.msra.mxu0 0.0
      %319 = vmatprep.subr.mxu0 0.0
      %320 = vmatpush1.xpose.msra.mxu0 0.0
      %321 = vmatprep.subr.mxu0 0.0
      %322 = vmatpush1.xpose.msra.mxu0 0.0
      %323 = vmatprep.subr.mxu0 0.0
      %324 = vmatpush1.xpose.msra.mxu0 0.0
      %325 = vmatprep.subr.mxu0 0.0
      %326 = vmatpush1.xpose.msra.mxu0 0.0
      %327 = vmatprep.subr.mxu0 0.0
      %328 = vmatpush1.xpose.msra.mxu0 0.0
      %329 = vmatprep.subr.mxu0 0.0
      %330 = vmatpush1.xpose.msra.mxu0 0.0
      %331 = vmatprep.subr.mxu0 0.0
      %332 = vmatpush1.xpose.msra.mxu0 0.0
      %333 = vmatprep.subr.mxu0 0.0
      %334 = vmatpush1.xpose.msra.mxu0 0.0
      %335 = vmatprep.subr.mxu0 0.0
      %336 = vmatpush1.xpose.msra.mxu0 0.0
      %337 = vmatprep.subr.mxu0 0.0
      %338 = vmatpush1.xpose.msra.mxu0 0.0
      %339 = vmatprep.subr.mxu0 0.0
      %340 = vmatpush1.xpose.msra.mxu0 0.0
      %341 = vmatprep.subr.mxu0 0.0
      %342 = vmatpush1.xpose.msra.mxu0 0.0
      %343 = vmatprep.subr.mxu0 0.0
      %344 = vmatpush1.xpose.msra.mxu0 %v311
      %345 = vmatprep.subr.mxu0 0.0
      %346 = vmatpush2.xpose.msra.mxu0 0.0
      %347 = vmatprep.subr.mxu0 0.0
      %348 = vmatpush2.xpose.msra.mxu0 0.0
      %349 = vmatprep.subr.mxu0 0.0
      %350 = vmatpush2.xpose.msra.mxu0 0.0
      %351 = vmatprep.subr.mxu0 0.0
      %352 = vmatpush2.xpose.msra.mxu0 0.0
      %353 = vmatprep.subr.mxu0 0.0
      %354 = vmatpush2.xpose.msra.mxu0 0.0
      %355 = vmatprep.subr.mxu0 0.0
      %356 = vmatpush2.xpose.msra.mxu0 0.0
      %357 = vmatprep.subr.mxu0 0.0
      %358 = vmatpush2.xpose.msra.mxu0 0.0
      %359 = vmatprep.subr.mxu0 0.0
      %360 = vmatpush2.xpose.msra.mxu0 0.0
      %361 = vmatprep.subr.mxu0 0.0
      %362 = vmatpush2.xpose.msra.mxu0 0.0
      %363 = vmatprep.subr.mxu0 0.0
      %364 = vmatpush2.xpose.msra.mxu0 0.0
      %365 = vmatprep.subr.mxu0 0.0
      %366 = vmatpush2.xpose.msra.mxu0 0.0
      %367 = vmatprep.subr.mxu0 0.0
      %368 = vmatpush2.xpose.msra.mxu0 0.0
      %369 = vmatprep.subr.mxu0 0.0
      %370 = vmatpush2.xpose.msra.mxu0 0.0
      %371 = vmatprep.subr.mxu0 0.0
      %372 = vmatpush2.xpose.msra.mxu0 0.0
      %373 = vmatprep.subr.mxu0 0.0
      %374 = vmatpush2.xpose.msra.mxu0 0.0
      %375 = vmatprep.subr.mxu0 0.0
      %376 = vmatpush2.xpose.msra.mxu0 0.0
      %377 = vmatprep.mubr.f32.mxu0 0.0
      %378 = vmatmul.mubr.f32.gmra.mxu0 %v308
      %v379 = vpop.f32.mrf.mxu0
      %v380 = vadd.f32 0.0, %v379
      %v381 = vpop.f32.mrf.mxu0
      %382 = vdwg.mxu0
      %v384 = vsel %vm230, %v220, 0
      %v387 = vsel %vm230, %v224, 0
      %389 = vmatprep.subr.mxu0 0.0
      %390 = vmatpush1.xpose.msra.mxu0 0.0
      %391 = vmatprep.subr.mxu0 0.0
      %392 = vmatpush1.xpose.msra.mxu0 0.0
      %393 = vmatprep.subr.mxu0 0.0
      %394 = vmatpush1.xpose.msra.mxu0 0.0
      %395 = vmatprep.subr.mxu0 0.0
      %396 = vmatpush1.xpose.msra.mxu0 0.0
      %397 = vmatprep.subr.mxu0 0.0
      %398 = vmatpush1.xpose.msra.mxu0 0.0
      %399 = vmatprep.subr.mxu0 0.0
      %400 = vmatpush1.xpose.msra.mxu0 0.0
      %401 = vmatprep.subr.mxu0 0.0
      %402 = vmatpush1.xpose.msra.mxu0 0.0
      %403 = vmatprep.subr.mxu0 0.0
      %404 = vmatpush1.xpose.msra.mxu0 0.0
      %405 = vmatprep.subr.mxu0 0.0
      %406 = vmatpush1.xpose.msra.mxu0 0.0
      %407 = vmatprep.subr.mxu0 0.0
      %408 = vmatpush1.xpose.msra.mxu0 0.0
      %409 = vmatprep.subr.mxu0 0.0
      %410 = vmatpush1.xpose.msra.mxu0 0.0
      %411 = vmatprep.subr.mxu0 0.0
      %412 = vmatpush1.xpose.msra.mxu0 0.0
      %413 = vmatprep.subr.mxu0 0.0
      %414 = vmatpush1.xpose.msra.mxu0 0.0
      %415 = vmatprep.subr.mxu0 0.0
      %416 = vmatpush1.xpose.msra.mxu0 0.0
      %417 = vmatprep.subr.mxu0 0.0
      %418 = vmatpush1.xpose.msra.mxu0 0.0
      %419 = vmatprep.subr.mxu0 0.0
      %420 = vmatpush1.xpose.msra.mxu0 %v387
      %421 = vmatprep.subr.mxu0 0.0
      %422 = vmatpush2.xpose.msra.mxu0 0.0
      %423 = vmatprep.subr.mxu0 0.0
      %424 = vmatpush2.xpose.msra.mxu0 0.0
      %425 = vmatprep.subr.mxu0 0.0
      %426 = vmatpush2.xpose.msra.mxu0 0.0
      %427 = vmatprep.subr.mxu0 0.0
      %428 = vmatpush2.xpose.msra.mxu0 0.0
      %429 = vmatprep.subr.mxu0 0.0
      %430 = vmatpush2.xpose.msra.mxu0 0.0
      %431 = vmatprep.subr.mxu0 0.0
      %432 = vmatpush2.xpose.msra.mxu0 0.0
      %433 = vmatprep.subr.mxu0 0.0
      %434 = vmatpush2.xpose.msra.mxu0 0.0
      %435 = vmatprep.subr.mxu0 0.0
      %436 = vmatpush2.xpose.msra.mxu0 0.0
      %437 = vmatprep.subr.mxu0 0.0
      %438 = vmatpush2.xpose.msra.mxu0 0.0
      %439 = vmatprep.subr.mxu0 0.0
      %440 = vmatpush2.xpose.msra.mxu0 0.0
      %441 = vmatprep.subr.mxu0 0.0
      %442 = vmatpush2.xpose.msra.mxu0 0.0
      %443 = vmatprep.subr.mxu0 0.0
      %444 = vmatpush2.xpose.msra.mxu0 0.0
      %445 = vmatprep.subr.mxu0 0.0
      %446 = vmatpush2.xpose.msra.mxu0 0.0
      %447 = vmatprep.subr.mxu0 0.0
      %448 = vmatpush2.xpose.msra.mxu0 0.0
      %449 = vmatprep.subr.mxu0 0.0
      %450 = vmatpush2.xpose.msra.mxu0 0.0
      %451 = vmatprep.subr.mxu0 0.0
      %452 = vmatpush2.xpose.msra.mxu0 0.0
      %453 = vmatprep.mubr.f32.mxu0 0.0
      %454 = vmatmul.mubr.f32.gmra.mxu0 %v384
      %v455 = vpop.f32.mrf.mxu0
      %v456 = vadd.f32 0.0, %v455
      %v457 = vpop.f32.mrf.mxu0
      %458 = vdwg.mxu0
      %v460 = vsel %vm230, %v221, 0
      %v463 = vsel %vm230, %v225, 0
      %465 = vmatprep.subr.mxu0 0.0
      %466 = vmatpush1.xpose.msra.mxu0 0.0
      %467 = vmatprep.subr.mxu0 0.0
      %468 = vmatpush1.xpose.msra.mxu0 0.0
      %469 = vmatprep.subr.mxu0 0.0
      %470 = vmatpush1.xpose.msra.mxu0 0.0
      %471 = vmatprep.subr.mxu0 0.0
      %472 = vmatpush1.xpose.msra.mxu0 0.0
      %473 = vmatprep.subr.mxu0 0.0
      %474 = vmatpush1.xpose.msra.mxu0 0.0
      %475 = vmatprep.subr.mxu0 0.0
      %476 = vmatpush1.xpose.msra.mxu0 0.0
      %477 = vmatprep.subr.mxu0 0.0
      %478 = vmatpush1.xpose.msra.mxu0 0.0
      %479 = vmatprep.subr.mxu0 0.0
      %480 = vmatpush1.xpose.msra.mxu0 0.0
      %481 = vmatprep.subr.mxu0 0.0
      %482 = vmatpush1.xpose.msra.mxu0 0.0
      %483 = vmatprep.subr.mxu0 0.0
      %484 = vmatpush1.xpose.msra.mxu0 0.0
      %485 = vmatprep.subr.mxu0 0.0
      %486 = vmatpush1.xpose.msra.mxu0 0.0
      %487 = vmatprep.subr.mxu0 0.0
      %488 = vmatpush1.xpose.msra.mxu0 0.0
      %489 = vmatprep.subr.mxu0 0.0
      %490 = vmatpush1.xpose.msra.mxu0 0.0
      %491 = vmatprep.subr.mxu0 0.0
      %492 = vmatpush1.xpose.msra.mxu0 0.0
      %493 = vmatprep.subr.mxu0 0.0
      %494 = vmatpush1.xpose.msra.mxu0 0.0
      %495 = vmatprep.subr.mxu0 0.0
      %496 = vmatpush1.xpose.msra.mxu0 %v463
      %497 = vmatprep.subr.mxu0 0.0
      %498 = vmatpush2.xpose.msra.mxu0 0.0
      %499 = vmatprep.subr.mxu0 0.0
      %500 = vmatpush2.xpose.msra.mxu0 0.0
      %501 = vmatprep.subr.mxu0 0.0
      %502 = vmatpush2.xpose.msra.mxu0 0.0
      %503 = vmatprep.subr.mxu0 0.0
      %504 = vmatpush2.xpose.msra.mxu0 0.0
      %505 = vmatprep.subr.mxu0 0.0
      %506 = vmatpush2.xpose.msra.mxu0 0.0
      %507 = vmatprep.subr.mxu0 0.0
      %508 = vmatpush2.xpose.msra.mxu0 0.0
      %509 = vmatprep.subr.mxu0 0.0
      %510 = vmatpush2.xpose.msra.mxu0 0.0
      %511 = vmatprep.subr.mxu0 0.0
      %512 = vmatpush2.xpose.msra.mxu0 0.0
      %513 = vmatprep.subr.mxu0 0.0
      %514 = vmatpush2.xpose.msra.mxu0 0.0
      %515 = vmatprep.subr.mxu0 0.0
      %516 = vmatpush2.xpose.msra.mxu0 0.0
      %517 = vmatprep.subr.mxu0 0.0
      %518 = vmatpush2.xpose.msra.mxu0 0.0
      %519 = vmatprep.subr.mxu0 0.0
      %520 = vmatpush2.xpose.msra.mxu0 0.0
      %521 = vmatprep.subr.mxu0 0.0
      %522 = vmatpush2.xpose.msra.mxu0 0.0
      %523 = vmatprep.subr.mxu0 0.0
      %524 = vmatpush2.xpose.msra.mxu0 0.0
      %525 = vmatprep.subr.mxu0 0.0
      %526 = vmatpush2.xpose.msra.mxu0 0.0
      %527 = vmatprep.subr.mxu0 0.0
      %528 = vmatpush2.xpose.msra.mxu0 0.0
      %529 = vmatprep.mubr.f32.mxu0 0.0
      %530 = vmatmul.mubr.f32.gmra.mxu0 %v460
      %v531 = vpop.f32.mrf.mxu0
      %v532 = vadd.f32 0.0, %v531
      %v533 = vpop.f32.mrf.mxu0
      %534 = vdwg.mxu0
      %v535 = vsel %vm230, %v304, -inf
      %536 = vmax.xlane.f32.xlu0 %v535
      %v537 = vpop.xlane.xlu0 %536
      %v538 = vsel %vm230, %v380, -inf
      %539 = vmax.xlane.f32.xlu0 %v538
      %v540 = vpop.xlane.xlu0 %539
      %v541 = vsel %vm230, %v456, -inf
      %542 = vmax.xlane.f32.xlu0 %v541
      %v543 = vpop.xlane.xlu0 %542
      %v544 = vsel %vm230, %v532, -inf
      %545 = vmax.xlane.f32.xlu0 %v544
      %v546 = vpop.xlane.xlu0 %545
      %v547 = vsub.f32 %v304, %v537
      %v548 = vsub.f32 %v380, %v540
      %v549 = vsub.f32 %v456, %v543
      %v550 = vsub.f32 %v532, %v546
      %v551 = vmul.f32 %v547, 1.442695
      %v552 = vpow.pop %v551
      %v553 = vmul.f32 %v548, 1.442695
      %v554 = vpow.pop %v553
      %v555 = vmul.f32 %v549, 1.442695
      %v556 = vpow.pop %v555
      %v557 = vmul.f32 %v550, 1.442695
      %v558 = vpow.pop %v557
      %v559 = vsel %vm230, %v552, 0.0
      %560 = vadd.xlane.f32.xlu0 %v559
      %v561 = vpop.xlane.xlu0 %560
      %v562 = vsel %vm230, %v554, 0.0
      %563 = vadd.xlane.f32.xlu0 %v562
      %v564 = vpop.xlane.xlu0 %563
      %v565 = vsel %vm230, %v556, 0.0
      %566 = vadd.xlane.f32.xlu0 %v565
      %v567 = vpop.xlane.xlu0 %566
      %v568 = vsel %vm230, %v558, 0.0
      %569 = vadd.xlane.f32.xlu0 %v568
      %v570 = vpop.xlane.xlu0 %569
      %v571 = vrcp.pop %v561
      %v572 = vrcp.pop %v564
      %v573 = vrcp.pop %v567
      %v574 = vrcp.pop %v570
      %v575 = vmul.f32 %v552, %v571
      %v576 = vmul.f32 %v554, %v572
      %v577 = vmul.f32 %v556, %v573
      %v578 = vmul.f32 %v558, %v574
      %v580 = vsel %vm230, %v575, 0
      %582 = vmatprep.subr.mxu0 0.0
      %583 = vmatpush1.msra.mxu0 0.0
      %584 = vmatprep.subr.mxu0 0.0
      %585 = vmatpush1.msra.mxu0 0.0
      %586 = vmatprep.subr.mxu0 0.0
      %587 = vmatpush1.msra.mxu0 0.0
      %588 = vmatprep.subr.mxu0 0.0
      %589 = vmatpush1.msra.mxu0 0.0
      %590 = vmatprep.subr.mxu0 0.0
      %591 = vmatpush1.msra.mxu0 0.0
      %592 = vmatprep.subr.mxu0 0.0
      %593 = vmatpush1.msra.mxu0 0.0
      %594 = vmatprep.subr.mxu0 0.0
      %595 = vmatpush1.msra.mxu0 0.0
      %596 = vmatprep.subr.mxu0 0.0
      %597 = vmatpush1.msra.mxu0 0.0
      %598 = vmatprep.subr.mxu0 0.0
      %599 = vmatpush1.msra.mxu0 0.0
      %600 = vmatprep.subr.mxu0 0.0
      %601 = vmatpush1.msra.mxu0 0.0
      %602 = vmatprep.subr.mxu0 0.0
      %603 = vmatpush1.msra.mxu0 0.0
      %604 = vmatprep.subr.mxu0 0.0
      %605 = vmatpush1.msra.mxu0 0.0
      %606 = vmatprep.subr.mxu0 0.0
      %607 = vmatpush1.msra.mxu0 0.0
      %608 = vmatprep.subr.mxu0 0.0
      %609 = vmatpush1.msra.mxu0 0.0
      %610 = vmatprep.subr.mxu0 0.0
      %611 = vmatpush1.msra.mxu0 0.0
      %612 = vmatprep.subr.mxu0 0.0
      %613 = vmatpush1.msra.mxu0 %v226
      %614 = vmatprep.subr.mxu0 0.0
      %615 = vmatpush2.msra.mxu0 0.0
      %616 = vmatprep.subr.mxu0 0.0
      %617 = vmatpush2.msra.mxu0 0.0
      %618 = vmatprep.subr.mxu0 0.0
      %619 = vmatpush2.msra.mxu0 0.0
      %620 = vmatprep.subr.mxu0 0.0
      %621 = vmatpush2.msra.mxu0 0.0
      %622 = vmatprep.subr.mxu0 0.0
      %623 = vmatpush2.msra.mxu0 0.0
      %624 = vmatprep.subr.mxu0 0.0
      %625 = vmatpush2.msra.mxu0 0.0
      %626 = vmatprep.subr.mxu0 0.0
      %627 = vmatpush2.msra.mxu0 0.0
      %628 = vmatprep.subr.mxu0 0.0
      %629 = vmatpush2.msra.mxu0 0.0
      %630 = vmatprep.subr.mxu0 0.0
      %631 = vmatpush2.msra.mxu0 0.0
      %632 = vmatprep.subr.mxu0 0.0
      %633 = vmatpush2.msra.mxu0 0.0
      %634 = vmatprep.subr.mxu0 0.0
      %635 = vmatpush2.msra.mxu0 0.0
      %636 = vmatprep.subr.mxu0 0.0
      %637 = vmatpush2.msra.mxu0 0.0
      %638 = vmatprep.subr.mxu0 0.0
      %639 = vmatpush2.msra.mxu0 0.0
      %640 = vmatprep.subr.mxu0 0.0
      %641 = vmatpush2.msra.mxu0 0.0
      %642 = vmatprep.subr.mxu0 0.0
      %643 = vmatpush2.msra.mxu0 0.0
      %644 = vmatprep.subr.mxu0 0.0
      %645 = vmatpush2.msra.mxu0 0.0
      %646 = vmatprep.mubr.f32.mxu0 0.0
      %647 = vmatmul.mubr.f32.gmra.mxu0 %v580
      %v648 = vpop.f32.mrf.mxu0
      %v649 = vadd.f32 0.0, %v648
      %v650 = vpop.f32.mrf.mxu0
      %651 = vdwg.mxu0
      %v653 = vsel %vm230, %v576, 0
      %655 = vmatprep.subr.mxu0 0.0
      %656 = vmatpush1.msra.mxu0 0.0
      %657 = vmatprep.subr.mxu0 0.0
      %658 = vmatpush1.msra.mxu0 0.0
      %659 = vmatprep.subr.mxu0 0.0
      %660 = vmatpush1.msra.mxu0 0.0
      %661 = vmatprep.subr.mxu0 0.0
      %662 = vmatpush1.msra.mxu0 0.0
      %663 = vmatprep.subr.mxu0 0.0
      %664 = vmatpush1.msra.mxu0 0.0
      %665 = vmatprep.subr.mxu0 0.0
      %666 = vmatpush1.msra.mxu0 0.0
      %667 = vmatprep.subr.mxu0 0.0
      %668 = vmatpush1.msra.mxu0 0.0
      %669 = vmatprep.subr.mxu0 0.0
      %670 = vmatpush1.msra.mxu0 0.0
      %671 = vmatprep.subr.mxu0 0.0
      %672 = vmatpush1.msra.mxu0 0.0
      %673 = vmatprep.subr.mxu0 0.0
      %674 = vmatpush1.msra.mxu0 0.0
      %675 = vmatprep.subr.mxu0 0.0
      %676 = vmatpush1.msra.mxu0 0.0
      %677 = vmatprep.subr.mxu0 0.0
      %678 = vmatpush1.msra.mxu0 0.0
      %679 = vmatprep.subr.mxu0 0.0
      %680 = vmatpush1.msra.mxu0 0.0
      %681 = vmatprep.subr.mxu0 0.0
      %682 = vmatpush1.msra.mxu0 0.0
      %683 = vmatprep.subr.mxu0 0.0
      %684 = vmatpush1.msra.mxu0 0.0
      %685 = vmatprep.subr.mxu0 0.0
      %686 = vmatpush1.msra.mxu0 %v227
      %687 = vmatprep.subr.mxu0 0.0
      %688 = vmatpush2.msra.mxu0 0.0
      %689 = vmatprep.subr.mxu0 0.0
      %690 = vmatpush2.msra.mxu0 0.0
      %691 = vmatprep.subr.mxu0 0.0
      %692 = vmatpush2.msra.mxu0 0.0
      %693 = vmatprep.subr.mxu0 0.0
      %694 = vmatpush2.msra.mxu0 0.0
      %695 = vmatprep.subr.mxu0 0.0
      %696 = vmatpush2.msra.mxu0 0.0
      %697 = vmatprep.subr.mxu0 0.0
      %698 = vmatpush2.msra.mxu0 0.0
      %699 = vmatprep.subr.mxu0 0.0
      %700 = vmatpush2.msra.mxu0 0.0
      %701 = vmatprep.subr.mxu0 0.0
      %702 = vmatpush2.msra.mxu0 0.0
      %703 = vmatprep.subr.mxu0 0.0
      %704 = vmatpush2.msra.mxu0 0.0
      %705 = vmatprep.subr.mxu0 0.0
      %706 = vmatpush2.msra.mxu0 0.0
      %707 = vmatprep.subr.mxu0 0.0
      %708 = vmatpush2.msra.mxu0 0.0
      %709 = vmatprep.subr.mxu0 0.0
      %710 = vmatpush2.msra.mxu0 0.0
      %711 = vmatprep.subr.mxu0 0.0
      %712 = vmatpush2.msra.mxu0 0.0
      %713 = vmatprep.subr.mxu0 0.0
      %714 = vmatpush2.msra.mxu0 0.0
      %715 = vmatprep.subr.mxu0 0.0
      %716 = vmatpush2.msra.mxu0 0.0
      %717 = vmatprep.subr.mxu0 0.0
      %718 = vmatpush2.msra.mxu0 0.0
      %719 = vmatprep.mubr.f32.mxu0 0.0
      %720 = vmatmul.mubr.f32.gmra.mxu0 %v653
      %v721 = vpop.f32.mrf.mxu0
      %v722 = vadd.f32 0.0, %v721
      %v723 = vpop.f32.mrf.mxu0
      %724 = vdwg.mxu0
      %v726 = vsel %vm230, %v577, 0
      %728 = vmatprep.subr.mxu0 0.0
      %729 = vmatpush1.msra.mxu0 0.0
      %730 = vmatprep.subr.mxu0 0.0
      %731 = vmatpush1.msra.mxu0 0.0
      %732 = vmatprep.subr.mxu0 0.0
      %733 = vmatpush1.msra.mxu0 0.0
      %734 = vmatprep.subr.mxu0 0.0
      %735 = vmatpush1.msra.mxu0 0.0
      %736 = vmatprep.subr.mxu0 0.0
      %737 = vmatpush1.msra.mxu0 0.0
      %738 = vmatprep.subr.mxu0 0.0
      %739 = vmatpush1.msra.mxu0 0.0
      %740 = vmatprep.subr.mxu0 0.0
      %741 = vmatpush1.msra.mxu0 0.0
      %742 = vmatprep.subr.mxu0 0.0
      %743 = vmatpush1.msra.mxu0 0.0
      %744 = vmatprep.subr.mxu0 0.0
      %745 = vmatpush1.msra.mxu0 0.0
      %746 = vmatprep.subr.mxu0 0.0
      %747 = vmatpush1.msra.mxu0 0.0
      %748 = vmatprep.subr.mxu0 0.0
      %749 = vmatpush1.msra.mxu0 0.0
      %750 = vmatprep.subr.mxu0 0.0
      %751 = vmatpush1.msra.mxu0 0.0
      %752 = vmatprep.subr.mxu0 0.0
      %753 = vmatpush1.msra.mxu0 0.0
      %754 = vmatprep.subr.mxu0 0.0
      %755 = vmatpush1.msra.mxu0 0.0
      %756 = vmatprep.subr.mxu0 0.0
      %757 = vmatpush1.msra.mxu0 0.0
      %758 = vmatprep.subr.mxu0 0.0
      %759 = vmatpush1.msra.mxu0 %v228
      %760 = vmatprep.subr.mxu0 0.0
      %761 = vmatpush2.msra.mxu0 0.0
      %762 = vmatprep.subr.mxu0 0.0
      %763 = vmatpush2.msra.mxu0 0.0
      %764 = vmatprep.subr.mxu0 0.0
      %765 = vmatpush2.msra.mxu0 0.0
      %766 = vmatprep.subr.mxu0 0.0
      %767 = vmatpush2.msra.mxu0 0.0
      %768 = vmatprep.subr.mxu0 0.0
      %769 = vmatpush2.msra.mxu0 0.0
      %770 = vmatprep.subr.mxu0 0.0
      %771 = vmatpush2.msra.mxu0 0.0
      %772 = vmatprep.subr.mxu0 0.0
      %773 = vmatpush2.msra.mxu0 0.0
      %774 = vmatprep.subr.mxu0 0.0
      %775 = vmatpush2.msra.mxu0 0.0
      %776 = vmatprep.subr.mxu0 0.0
      %777 = vmatpush2.msra.mxu0 0.0
      %778 = vmatprep.subr.mxu0 0.0
      %779 = vmatpush2.msra.mxu0 0.0
      %780 = vmatprep.subr.mxu0 0.0
      %781 = vmatpush2.msra.mxu0 0.0
      %782 = vmatprep.subr.mxu0 0.0
      %783 = vmatpush2.msra.mxu0 0.0
      %784 = vmatprep.subr.mxu0 0.0
      %785 = vmatpush2.msra.mxu0 0.0
      %786 = vmatprep.subr.mxu0 0.0
      %787 = vmatpush2.msra.mxu0 0.0
      %788 = vmatprep.subr.mxu0 0.0
      %789 = vmatpush2.msra.mxu0 0.0
      %790 = vmatprep.subr.mxu0 0.0
      %791 = vmatpush2.msra.mxu0 0.0
      %792 = vmatprep.mubr.f32.mxu0 0.0
      %793 = vmatmul.mubr.f32.gmra.mxu0 %v726
      %v794 = vpop.f32.mrf.mxu0
      %v795 = vadd.f32 0.0, %v794
      %v796 = vpop.f32.mrf.mxu0
      %797 = vdwg.mxu0
      %v799 = vsel %vm230, %v578, 0
      %801 = vmatprep.subr.mxu0 0.0
      %802 = vmatpush1.msra.mxu0 0.0
      %803 = vmatprep.subr.mxu0 0.0
      %804 = vmatpush1.msra.mxu0 0.0
      %805 = vmatprep.subr.mxu0 0.0
      %806 = vmatpush1.msra.mxu0 0.0
      %807 = vmatprep.subr.mxu0 0.0
      %808 = vmatpush1.msra.mxu0 0.0
      %809 = vmatprep.subr.mxu0 0.0
      %810 = vmatpush1.msra.mxu0 0.0
      %811 = vmatprep.subr.mxu0 0.0
      %812 = vmatpush1.msra.mxu0 0.0
      %813 = vmatprep.subr.mxu0 0.0
      %814 = vmatpush1.msra.mxu0 0.0
      %815 = vmatprep.subr.mxu0 0.0
      %816 = vmatpush1.msra.mxu0 0.0
      %817 = vmatprep.subr.mxu0 0.0
      %818 = vmatpush1.msra.mxu0 0.0
      %819 = vmatprep.subr.mxu0 0.0
      %820 = vmatpush1.msra.mxu0 0.0
      %821 = vmatprep.subr.mxu0 0.0
      %822 = vmatpush1.msra.mxu0 0.0
      %823 = vmatprep.subr.mxu0 0.0
      %824 = vmatpush1.msra.mxu0 0.0
      %825 = vmatprep.subr.mxu0 0.0
      %826 = vmatpush1.msra.mxu0 0.0
      %827 = vmatprep.subr.mxu0 0.0
      %828 = vmatpush1.msra.mxu0 0.0
      %829 = vmatprep.subr.mxu0 0.0
      %830 = vmatpush1.msra.mxu0 0.0
      %831 = vmatprep.subr.mxu0 0.0
      %832 = vmatpush1.msra.mxu0 %v229
      %833 = vmatprep.subr.mxu0 0.0
      %834 = vmatpush2.msra.mxu0 0.0
      %835 = vmatprep.subr.mxu0 0.0
      %836 = vmatpush2.msra.mxu0 0.0
      %837 = vmatprep.subr.mxu0 0.0
      %838 = vmatpush2.msra.mxu0 0.0
      %839 = vmatprep.subr.mxu0 0.0
      %840 = vmatpush2.msra.mxu0 0.0
      %841 = vmatprep.subr.mxu0 0.0
      %842 = vmatpush2.msra.mxu0 0.0
      %843 = vmatprep.subr.mxu0 0.0
      %844 = vmatpush2.msra.mxu0 0.0
      %845 = vmatprep.subr.mxu0 0.0
      %846 = vmatpush2.msra.mxu0 0.0
      %847 = vmatprep.subr.mxu0 0.0
      %848 = vmatpush2.msra.mxu0 0.0
      %849 = vmatprep.subr.mxu0 0.0
      %850 = vmatpush2.msra.mxu0 0.0
      %851 = vmatprep.subr.mxu0 0.0
      %852 = vmatpush2.msra.mxu0 0.0
      %853 = vmatprep.subr.mxu0 0.0
      %854 = vmatpush2.msra.mxu0 0.0
      %855 = vmatprep.subr.mxu0 0.0
      %856 = vmatpush2.msra.mxu0 0.0
      %857 = vmatprep.subr.mxu0 0.0
      %858 = vmatpush2.msra.mxu0 0.0
      %859 = vmatprep.subr.mxu0 0.0
      %860 = vmatpush2.msra.mxu0 0.0
      %861 = vmatprep.subr.mxu0 0.0
      %862 = vmatpush2.msra.mxu0 0.0
      %863 = vmatprep.subr.mxu0 0.0
      %864 = vmatpush2.msra.mxu0 0.0
      %865 = vmatprep.mubr.f32.mxu0 0.0
      %866 = vmatmul.mubr.f32.gmra.mxu0 %v799
      %v867 = vpop.f32.mrf.mxu0
      %v868 = vadd.f32 0.0, %v867
      %v869 = vpop.f32.mrf.mxu0
      %870 = vdwg.mxu0
      %871 = vst.msk [vmem:[%s216] sm:$0xff] %vm230, %v649
      %872 = vst.msk [vmem:[%s216 + $0x8] sm:$0xff] %vm230, %v722
      %873 = vst.msk [vmem:[%s216 + $0x10] sm:$0xff] %vm230, %v795
      %874 = vst.msk [vmem:[%s216 + $0x18] sm:$0xff] %vm230, %v868
      %s875 = smul.u32 4, %s14
      %p876 = scmp.lt.s32.totalorder %s875, 7
      %s877 = scalar_select %p876, %s875, 7
      %s878 = smul.addr %s877, 8
      %s879 = scalar_lea.vmem %s3, %s878
      // Predicated region
      $region33: #{multi_head_attention.4} parent=31 // pred_check
        %p880 = pneg %p110
      $region34: #{multi_head_attention.4} parent=31 // pred_check_branch
        %882 = sbr.rel (%p880) target = $region36
      $region35: #{multi_head_attention.4} parent=31 // pred_region
        %s883 = smul.u32 4, %s14
      $region36: #{multi_head_attention.4} parent=31 // pred_fallthru
        _
    $region32: #{multi_head_attention.4} parent=5 // pred_fallthru
      _
    %p884 = scmp.le.s32.totalorder 2, %s9
    // Predicated region
    $region37: #{multi_head_attention.4} parent=5 // pred_check
      %p885 = pneg %p884
    $region38: #{multi_head_attention.4} parent=5 // pred_check_branch
      %887 = sbr.rel (%p885) target = $region40
    $region39: #{multi_head_attention.4} parent=5 // pred_region
      %s888 = ssub.s32 %s9, 2
      // Predicated region
      $region41: #{multi_head_attention.4} parent=39 // pred_check
        %p889 = pneg %p116
      $region42: #{multi_head_attention.4} parent=39 // pred_check_branch
        %891 = sbr.rel (%p889) target = $region44
      $region43: #{multi_head_attention.4} parent=39 // pred_region
        %s892 = smul.u32 4, %s15
        %p893 = scmp.lt.s32.totalorder %s892, 7
        %s894 = scalar_select %p893, %s892, 7
        %s895 = smul.addr %s894, 8
        %s896 = scalar_lea.vmem %s3, %s895
      $region44: #{multi_head_attention.4} parent=39 // pred_fallthru
        _
    $region40: #{multi_head_attention.4} parent=5 // pred_fallthru
      _
  $region6: #{multi_head_attention.4} parent=0 // loop_footer
    %s13 = sadd.s32 1, %s9
  $region7: #{multi_head_attention.4} parent=0 // loop_footer_branch
    %8 = sbr.rel target = $region3
  $region8: #{multi_head_attention.4} parent=0 // loop_exit
    _

</llo_original>
